<compile_context>
chip_gen: v7x
topology: tpu7x:2x2x1
jax: 0.10.0
libtpu: 0.0.40
codegen_flags: <defaults>
</compile_context>

<pallas_src>
import jax
import jax.numpy as jnp
from jax.experimental import pallas as pl
from jax.experimental.pallas import tpu as pltpu

MIN_NORM = 1e-15          # hgcn's clamp_min for norms / denominators
BALL_EPS = 4e-3           # hgcn PoincareBall float32 boundary epsilon
ROW_TILE = 512            # max rows per grid step (multiple of 8)


def _round_up(x, m):
    return ((x + m - 1) // m) * m


def _artanh(x):
    x = jnp.clip(x, -1.0 + 1e-7, 1.0 - 1e-7)
    return 0.5 * jnp.log((1.0 + x) / (1.0 - x))


def _norm(v):
    return jnp.maximum(jnp.sqrt(jnp.sum(v * v, axis=-1, keepdims=True)), MIN_NORM)


# Pure-JAX helpers (used by the one-time param prep and by the reference).
def _proj(v, c):
    n = _norm(v)
    maxnorm = (1.0 - BALL_EPS) / jnp.sqrt(c)
    return jnp.where(n > maxnorm, v / n * maxnorm, v)


def _expmap0(u, c):
    sqrt_c = jnp.sqrt(c)
    un = _norm(u)
    return jnp.tanh(sqrt_c * un) * u / (sqrt_c * un)


def hnn_encode_kernel(s_ref, x_ref, wt_ref, hb_ref, o_ref):
    """One HNN layer on the Poincare ball: expmap0 -> HypLinear -> HypAct(relu).

    s_ref (SMEM): [c, sqrt_c, maxnorm, y2=||hyp_b||^2]  (all x-independent, hoisted)
    x_ref:  (rt, d_in) row tile
    wt_ref: (d_in, d_out) W^T, resident
    hb_ref: (1, d_out) proj(expmap0(bias)), resident
    """
    c = s_ref[0]
    sqrt_c = s_ref[1]
    maxnorm = s_ref[2]
    y2 = s_ref[3]

    def proj_scale(n):
        # n: clamped per-row norm [rows, 1] -> multiplicative projection factor
        return jnp.where(n > maxnorm, maxnorm / n, 1.0)

    x = x_ref[...].astype(jnp.float32)

    # ---- proj(expmap0(x)): folded into a single broadcast multiply -------------
    x_n = jnp.maximum(jnp.sqrt(jnp.sum(x * x, axis=-1, keepdims=True)), MIN_NORM)
    exp_f = jnp.tanh(sqrt_c * x_n) / (sqrt_c * x_n)            # expmap0 scale [rows,1]
    xh_n = jnp.maximum(exp_f * x_n, MIN_NORM)                  # ||expmap0(x)|| (analytic)
    x_hyp = x * (exp_f * proj_scale(xh_n))                     # proj(expmap0(x))
    xh_norm = jnp.minimum(xh_n, maxnorm)                       # ||x_hyp|| after proj

    # ---- HypLinear: proj(mobius_matvec(W, x_hyp)); `res` never materialized ----
    mx = jnp.dot(x_hyp, wt_ref[...],
                 preferred_element_type=jnp.float32,
                 precision=jax.lax.Precision.HIGHEST)
    mx_sq = jnp.sum(mx * mx, axis=-1, keepdims=True)
    mx_n = jnp.maximum(jnp.sqrt(mx_sq), MIN_NORM)
    mv_f = jnp.tanh(mx_n / xh_norm * _artanh(sqrt_c * xh_norm)) / (mx_n * sqrt_c)
    # all-zero-row guard (reference uses sum(|mx|)==0; squares underflowing to 0 is
    # the only — practically negligible — difference).
    mv_f = jnp.where(mx_sq > 0.0, mv_f, 0.0)
    res_n = jnp.maximum(mv_f * mx_n, MIN_NORM)
    res_scale = mv_f * proj_scale(res_n)                       # res = res_scale * mx
    res_norm = jnp.minimum(res_n, maxnorm)
    x2 = res_norm * res_norm

    # ---- bias: proj(mobius_add(res, hyp_b)); hyp_b / y2 precomputed ------------
    hb = hb_ref[...].astype(jnp.float32)                       # (1, D)
    mxhb = jnp.sum(mx * hb, axis=-1, keepdims=True)            # (rows, 1)
    xy = res_scale * mxhb                                      # <res, hyp_b>
    inv_den = 1.0 / jnp.maximum(1.0 + 2.0 * c * xy + c * c * x2 * y2, MIN_NORM)
    coef_mx = (1.0 + 2.0 * c * xy + c * y2) * inv_den * res_scale
    coef_hb = (1.0 - c * x2) * inv_den
    h_pre = coef_mx * mx + coef_hb * hb
    h_n = jnp.maximum(jnp.sqrt(jnp.sum(h_pre * h_pre, axis=-1, keepdims=True)), MIN_NORM)
    h_scale = proj_scale(h_n)
    h_norm = jnp.minimum(h_n, maxnorm)                         # ||proj(h_pre)||

    # ---- HypAct: relu in the tangent space at the origin, back onto the ball ---
    log_f = _artanh(sqrt_c * h_norm) / (sqrt_c * h_norm)       # logmap0 scale [rows,1]
    xt = jnp.maximum(h_pre * (h_scale * log_f), 0.0)           # relu(logmap0(proj(h)))
    xt_n = jnp.maximum(jnp.sqrt(jnp.sum(xt * xt, axis=-1, keepdims=True)), MIN_NORM)
    out_f = jnp.tanh(sqrt_c * xt_n) / (sqrt_c * xt_n)          # expmap0 scale
    out_n = jnp.maximum(out_f * xt_n, MIN_NORM)
    o_ref[...] = (xt * (out_f * proj_scale(out_n))).astype(o_ref.dtype)


def prepare_hnn_params(weight, bias, c):
    """One-time, x-independent prep: W^T, hyp_b = proj(expmap0(bias)), SMEM scalars."""
    c_f = jnp.float32(c)
    wt = jnp.asarray(weight, jnp.float32).T                    # (d_in, d_out)
    b = jnp.asarray(bias, jnp.float32).reshape(1, -1)
    hyp_b = _proj(_expmap0(b, c_f), c_f)                       # (1, d_out)
    sqrt_c = jnp.sqrt(c_f)
    maxnorm = (1.0 - BALL_EPS) / sqrt_c
    y2 = jnp.sum(hyp_b * hyp_b)
    scalars = jnp.stack([c_f, sqrt_c, maxnorm, y2]).astype(jnp.float32)
    return wt, hyp_b, scalars


def post_hnn_forward(x, wt, hyp_b, scalars, *, row_tile=ROW_TILE):
    """x: [N, D_in] f32; wt: [D_in, D_out] (= W^T); hyp_b: [1, D_out]; scalars: [4]."""
    n, d_in = x.shape
    d_in_w, d_out = wt.shape
    assert d_in_w == d_in
    x = jnp.asarray(x, jnp.float32)

    # Row tile: multiple of 8, capped so the grid has ~8 steps (pipelining on every
    # generation; v7x megacore gets >=4 steps per TensorCore), max 512 for big N.
    rt = max(8, min(_round_up(row_tile, 8), _round_up(max(-(-n // 8), 1), 8)))

    # Pad rows only to a multiple of 8 (no-op for most N); the last grid block may be
    # partial (cdiv grid) rather than rounding N up to a multiple of rt.
    n_p = _round_up(n, 8)
    if n_p != n:
        x = jnp.zeros((n_p, d_in), jnp.float32).at[:n].set(x)

    grid = (pl.cdiv(n_p, rt),)
    out = pl.pallas_call(
        hnn_encode_kernel,
        out_shape=jax.ShapeDtypeStruct((n_p, d_out), jnp.float32),
        grid_spec=pltpu.PrefetchScalarGridSpec(
            num_scalar_prefetch=0,
            grid=grid,
            in_specs=[
                pl.BlockSpec(memory_space=pltpu.MemorySpace.SMEM),  # [c, sqrt_c, maxnorm, y2]
                pl.BlockSpec((rt, d_in), lambda i: (i, 0)),         # x row tile (unpadded lanes)
                pl.BlockSpec((d_in, d_out), lambda i: (0, 0)),      # W^T (resident, unpadded)
                pl.BlockSpec((1, d_out), lambda i: (0, 0)),         # hyp_b (resident)
            ],
            out_specs=pl.BlockSpec((rt, d_out), lambda i: (i, 0)),  # unpadded output
        ),
        compiler_params=pltpu.CompilerParams(dimension_semantics=("parallel",)),
    )(scalars, x, wt, hyp_b)
    return out[:n] if n_p != n else out


# ---------------------------------------------------------------------------
# Pure-JAX reference of the original module math, for a correctness check.
def _reference(x, weight, bias, c):
    sqrt_c = jnp.sqrt(c)
    x_hyp = _proj(_expmap0(x, c), c)
    x_norm = _norm(x_hyp)
    mx = jnp.dot(x_hyp, weight.T, precision=jax.lax.Precision.HIGHEST)
    mx_norm = _norm(mx)
    res_c = jnp.tanh(mx_norm / x_norm * _artanh(sqrt_c * x_norm)) * mx / (mx_norm * sqrt_c)
    mv = jnp.where(jnp.sum(jnp.abs(mx), -1, keepdims=True) == 0.0, 0.0, res_c)
    res = _proj(mv, c)
    hyp_b = _proj(_expmap0(bias.reshape(1, -1), c), c)
    x2 = jnp.sum(res * res, -1, keepdims=True)
    y2 = jnp.sum(hyp_b * hyp_b, -1, keepdims=True)
    xy = jnp.sum(res * hyp_b, -1, keepdims=True)
    num = (1.0 + 2.0 * c * xy + c * y2) * res + (1.0 - c * x2) * hyp_b
    den = jnp.maximum(1.0 + 2.0 * c * xy + c * c * x2 * y2, MIN_NORM)
    h = _proj(num / den, c)
    h_norm = _norm(h)
    xt = jnp.maximum((1.0 / sqrt_c) * _artanh(sqrt_c * h_norm) / h_norm * h, 0.0)
    return _proj(_expmap0(xt, c), c)


if __name__ == "__main__":
    key = jax.random.PRNGKey(0)
    kx, kw, kb = jax.random.split(key, 3)

    N, D_IN, D_OUT = 512, 32, 32               # small shapes; rt=64 -> 8 grid steps
    C = 1.0                                    # curvature (args.pre_c / nn.Parameter([1.0]))

    x = jax.random.normal(kx, (N, D_IN), dtype=jnp.float32)
    # Xavier-uniform-ish weight init (gain sqrt(2)); bias perturbed so the mobius-add
    # bias path is exercised (HypLinear zero-inits bias).
    limit = (2.0 * 6.0 / (D_IN + D_OUT)) ** 0.5
    weight = jax.random.uniform(kw, (D_OUT, D_IN), jnp.float32, -limit, limit)
    bias = 0.01 * jax.random.normal(kb, (D_OUT,), dtype=jnp.float32)

    wt, hyp_b, scalars = prepare_hnn_params(weight, bias, C)   # one-time param prep
    out = post_hnn_forward(x, wt, hyp_b, scalars)
    out = jax.block_until_ready(out)

    ref = _reference(x, weight, bias, jnp.float32(C))
    assert out.shape == (N, D_OUT)
    assert jnp.allclose(out, ref, atol=2e-5, rtol=2e-5), "mismatch vs JAX reference"

    # TODO(synk): args.manifold == "Hyperboloid" variant (extra time coordinate) not
    # implemented; this kernel covers the PoincareBall HNN encoder path.
    print("KERNEL_OK")
</pallas_src>

<mosaic_0001>
module attributes {stable_mosaic.version = 11 : i64} {
  func.func @hnn_encode_kernel(%arg0: i32, %arg1: memref<4xf32, #tpu.memory_space<smem>>, %arg2: memref<64x32xf32, #tpu.memory_space<vmem>>, %arg3: memref<32x32xf32, #tpu.memory_space<vmem>>, %arg4: memref<1x32xf32, #tpu.memory_space<vmem>>, %arg5: memref<64x32xf32, #tpu.memory_space<vmem>>) attributes {dimension_semantics = [#tpu.dimension_semantics<parallel>], iteration_bounds = array<i64: 8>, scalar_prefetch = 0 : i64, scratch_operands = 0 : i64, tpu.core_type = #tpu.core_type<tc>, window_params = [{transform_indices = @transform_0, window_bounds = array<i64: 4>}, {transform_indices = @transform_1, window_bounds = array<i64: 64, 32>}, {pipeline_mode = #tpu.pipeline_mode<synchronous>, transform_indices = @transform_2, window_bounds = array<i64: 32, 32>}, {pipeline_mode = #tpu.pipeline_mode<synchronous>, transform_indices = @transform_3, window_bounds = array<i64: 1, 32>}, {transform_indices = @transform_4, window_bounds = array<i64: 64, 32>}]} {
    %c0 = arith.constant 0 : index
    %0 = memref.load %arg1[%c0] : memref<4xf32, #tpu.memory_space<smem>>
    %c1 = arith.constant 1 : index
    %1 = memref.load %arg1[%c1] : memref<4xf32, #tpu.memory_space<smem>>
    %c2 = arith.constant 2 : index
    %2 = memref.load %arg1[%c2] : memref<4xf32, #tpu.memory_space<smem>>
    %c3 = arith.constant 3 : index
    %3 = memref.load %arg1[%c3] : memref<4xf32, #tpu.memory_space<smem>>
    %c0_0 = arith.constant 0 : index
    %c0_1 = arith.constant 0 : index
    %4 = vector.load %arg2[%c0_0, %c0_1] : memref<64x32xf32, #tpu.memory_space<vmem>>, vector<64x32xf32>
    %5 = arith.mulf %4, %4 : vector<64x32xf32>
    %cst = arith.constant dense<0.000000e+00> : vector<64xf32>
    %6 = vector.multi_reduction <add>, %5, %cst [1] : vector<64x32xf32> to vector<64xf32>
    %7 = vector.shape_cast %6 : vector<64xf32> to vector<64x1xf32>
    %8 = math.sqrt %7 : vector<64x1xf32>
    %cst_2 = arith.constant 1.000000e-15 : f32
    %9 = vector.broadcast %cst_2 : f32 to vector<64x1xf32>
    %10 = arith.maximumf %8, %9 : vector<64x1xf32>
    %11 = vector.broadcast %1 : f32 to vector<64x1xf32>
    %12 = arith.mulf %11, %10 : vector<64x1xf32>
    %13 = math.tanh %12 : vector<64x1xf32>
    %14 = vector.broadcast %1 : f32 to vector<64x1xf32>
    %15 = arith.mulf %14, %10 : vector<64x1xf32>
    %16 = arith.divf %13, %15 : vector<64x1xf32>
    %17 = arith.mulf %16, %10 : vector<64x1xf32>
    %cst_3 = arith.constant 1.000000e-15 : f32
    %18 = vector.broadcast %cst_3 : f32 to vector<64x1xf32>
    %19 = arith.maximumf %17, %18 : vector<64x1xf32>
    %20 = vector.broadcast %2 : f32 to vector<64x1xf32>
    %21 = arith.cmpf ogt, %19, %20 : vector<64x1xf32>
    %22 = vector.broadcast %2 : f32 to vector<64x1xf32>
    %23 = arith.divf %22, %19 : vector<64x1xf32>
    %cst_4 = arith.constant 1.000000e+00 : f32
    %24 = vector.broadcast %cst_4 : f32 to vector<64x1xf32>
    %25 = arith.select %21, %23, %24 : vector<64x1xi1>, vector<64x1xf32>
    %26 = arith.mulf %16, %25 : vector<64x1xf32>
    %27 = vector.broadcast %26 : vector<64x1xf32> to vector<64x32xf32>
    %28 = arith.mulf %4, %27 : vector<64x32xf32>
    %29 = vector.broadcast %2 : f32 to vector<64x1xf32>
    %30 = arith.minimumf %19, %29 : vector<64x1xf32>
    %c0_5 = arith.constant 0 : index
    %c0_6 = arith.constant 0 : index
    %31 = vector.load %arg3[%c0_5, %c0_6] : memref<32x32xf32, #tpu.memory_space<vmem>>, vector<32x32xf32>
    %cst_7 = arith.constant dense<0.000000e+00> : vector<64x32xf32>
    %32 = tpu.matmul %28, %31, %cst_7 {dimension_numbers = #tpu.dot_dimension_numbers<[1], [0], [0], [1], [0, 0, 1, 1], [], []>, precision = #tpu.contract_precision<fp32>} : vector<64x32xf32>, vector<32x32xf32>, vector<64x32xf32> -> vector<64x32xf32>
    %33 = arith.mulf %32, %32 : vector<64x32xf32>
    %cst_8 = arith.constant dense<0.000000e+00> : vector<64xf32>
    %34 = vector.multi_reduction <add>, %33, %cst_8 [1] : vector<64x32xf32> to vector<64xf32>
    %35 = vector.shape_cast %34 : vector<64xf32> to vector<64x1xf32>
    %36 = math.sqrt %35 : vector<64x1xf32>
    %cst_9 = arith.constant 1.000000e-15 : f32
    %37 = vector.broadcast %cst_9 : f32 to vector<64x1xf32>
    %38 = arith.maximumf %36, %37 : vector<64x1xf32>
    %39 = arith.divf %38, %30 : vector<64x1xf32>
    %40 = vector.broadcast %1 : f32 to vector<64x1xf32>
    %41 = arith.mulf %40, %30 : vector<64x1xf32>
    %cst_10 = arith.constant -0.99999988 : f32
    %cst_11 = arith.constant 0.99999988 : f32
    %42 = vector.broadcast %cst_10 : f32 to vector<64x1xf32>
    %43 = arith.maximumf %42, %41 : vector<64x1xf32>
    %44 = vector.broadcast %cst_11 : f32 to vector<64x1xf32>
    %45 = arith.minimumf %44, %43 : vector<64x1xf32>
    %cst_12 = arith.constant 1.000000e+00 : f32
    %46 = vector.broadcast %cst_12 : f32 to vector<64x1xf32>
    %47 = arith.addf %46, %45 : vector<64x1xf32>
    %cst_13 = arith.constant 1.000000e+00 : f32
    %48 = vector.broadcast %cst_13 : f32 to vector<64x1xf32>
    %49 = arith.subf %48, %45 : vector<64x1xf32>
    %50 = arith.divf %47, %49 : vector<64x1xf32>
    %51 = math.log %50 : vector<64x1xf32>
    %cst_14 = arith.constant 5.000000e-01 : f32
    %52 = vector.broadcast %cst_14 : f32 to vector<64x1xf32>
    %53 = arith.mulf %52, %51 : vector<64x1xf32>
    %54 = arith.mulf %39, %53 : vector<64x1xf32>
    %55 = math.tanh %54 : vector<64x1xf32>
    %56 = vector.broadcast %1 : f32 to vector<64x1xf32>
    %57 = arith.mulf %38, %56 : vector<64x1xf32>
    %58 = arith.divf %55, %57 : vector<64x1xf32>
    %cst_15 = arith.constant 0.000000e+00 : f32
    %59 = vector.broadcast %cst_15 : f32 to vector<64x1xf32>
    %60 = arith.cmpf ogt, %35, %59 : vector<64x1xf32>
    %cst_16 = arith.constant 0.000000e+00 : f32
    %61 = vector.broadcast %cst_16 : f32 to vector<64x1xf32>
    %62 = arith.select %60, %58, %61 : vector<64x1xi1>, vector<64x1xf32>
    %63 = arith.mulf %62, %38 : vector<64x1xf32>
    %cst_17 = arith.constant 1.000000e-15 : f32
    %64 = vector.broadcast %cst_17 : f32 to vector<64x1xf32>
    %65 = arith.maximumf %63, %64 : vector<64x1xf32>
    %66 = vector.broadcast %2 : f32 to vector<64x1xf32>
    %67 = arith.cmpf ogt, %65, %66 : vector<64x1xf32>
    %68 = vector.broadcast %2 : f32 to vector<64x1xf32>
    %69 = arith.divf %68, %65 : vector<64x1xf32>
    %cst_18 = arith.constant 1.000000e+00 : f32
    %70 = vector.broadcast %cst_18 : f32 to vector<64x1xf32>
    %71 = arith.select %67, %69, %70 : vector<64x1xi1>, vector<64x1xf32>
    %72 = arith.mulf %62, %71 : vector<64x1xf32>
    %73 = vector.broadcast %2 : f32 to vector<64x1xf32>
    %74 = arith.minimumf %65, %73 : vector<64x1xf32>
    %75 = arith.mulf %74, %74 : vector<64x1xf32>
    %c0_19 = arith.constant 0 : index
    %c0_20 = arith.constant 0 : index
    %76 = vector.load %arg4[%c0_19, %c0_20] : memref<1x32xf32, #tpu.memory_space<vmem>>, vector<1x32xf32>
    %77 = vector.broadcast %76 : vector<1x32xf32> to vector<64x32xf32>
    %78 = arith.mulf %32, %77 : vector<64x32xf32>
    %cst_21 = arith.constant dense<0.000000e+00> : vector<64xf32>
    %79 = vector.multi_reduction <add>, %78, %cst_21 [1] : vector<64x32xf32> to vector<64xf32>
    %80 = vector.shape_cast %79 : vector<64xf32> to vector<64x1xf32>
    %81 = arith.mulf %72, %80 : vector<64x1xf32>
    %cst_22 = arith.constant 2.000000e+00 : f32
    %82 = arith.mulf %cst_22, %0 : f32
    %83 = vector.broadcast %82 : f32 to vector<64x1xf32>
    %84 = arith.mulf %83, %81 : vector<64x1xf32>
    %cst_23 = arith.constant 1.000000e+00 : f32
    %85 = vector.broadcast %cst_23 : f32 to vector<64x1xf32>
    %86 = arith.addf %85, %84 : vector<64x1xf32>
    %87 = arith.mulf %0, %0 : f32
    %88 = vector.broadcast %87 : f32 to vector<64x1xf32>
    %89 = arith.mulf %88, %75 : vector<64x1xf32>
    %90 = vector.broadcast %3 : f32 to vector<64x1xf32>
    %91 = arith.mulf %89, %90 : vector<64x1xf32>
    %92 = arith.addf %86, %91 : vector<64x1xf32>
    %cst_24 = arith.constant 1.000000e-15 : f32
    %93 = vector.broadcast %cst_24 : f32 to vector<64x1xf32>
    %94 = arith.maximumf %92, %93 : vector<64x1xf32>
    %cst_25 = arith.constant 1.000000e+00 : f32
    %95 = vector.broadcast %cst_25 : f32 to vector<64x1xf32>
    %96 = arith.divf %95, %94 : vector<64x1xf32>
    %cst_26 = arith.constant 2.000000e+00 : f32
    %97 = arith.mulf %cst_26, %0 : f32
    %98 = vector.broadcast %97 : f32 to vector<64x1xf32>
    %99 = arith.mulf %98, %81 : vector<64x1xf32>
    %cst_27 = arith.constant 1.000000e+00 : f32
    %100 = vector.broadcast %cst_27 : f32 to vector<64x1xf32>
    %101 = arith.addf %100, %99 : vector<64x1xf32>
    %102 = arith.mulf %0, %3 : f32
    %103 = vector.broadcast %102 : f32 to vector<64x1xf32>
    %104 = arith.addf %101, %103 : vector<64x1xf32>
    %105 = arith.mulf %104, %96 : vector<64x1xf32>
    %106 = arith.mulf %105, %72 : vector<64x1xf32>
    %107 = vector.broadcast %0 : f32 to vector<64x1xf32>
    %108 = arith.mulf %107, %75 : vector<64x1xf32>
    %cst_28 = arith.constant 1.000000e+00 : f32
    %109 = vector.broadcast %cst_28 : f32 to vector<64x1xf32>
    %110 = arith.subf %109, %108 : vector<64x1xf32>
    %111 = arith.mulf %110, %96 : vector<64x1xf32>
    %112 = vector.broadcast %106 : vector<64x1xf32> to vector<64x32xf32>
    %113 = arith.mulf %112, %32 : vector<64x32xf32>
    %114 = vector.broadcast %111 : vector<64x1xf32> to vector<64x32xf32>
    %115 = vector.broadcast %76 : vector<1x32xf32> to vector<64x32xf32>
    %116 = arith.mulf %114, %115 : vector<64x32xf32>
    %117 = arith.addf %113, %116 : vector<64x32xf32>
    %118 = arith.mulf %117, %117 : vector<64x32xf32>
    %cst_29 = arith.constant dense<0.000000e+00> : vector<64xf32>
    %119 = vector.multi_reduction <add>, %118, %cst_29 [1] : vector<64x32xf32> to vector<64xf32>
    %120 = vector.shape_cast %119 : vector<64xf32> to vector<64x1xf32>
    %121 = math.sqrt %120 : vector<64x1xf32>
    %cst_30 = arith.constant 1.000000e-15 : f32
    %122 = vector.broadcast %cst_30 : f32 to vector<64x1xf32>
    %123 = arith.maximumf %121, %122 : vector<64x1xf32>
    %124 = vector.broadcast %2 : f32 to vector<64x1xf32>
    %125 = arith.cmpf ogt, %123, %124 : vector<64x1xf32>
    %126 = vector.broadcast %2 : f32 to vector<64x1xf32>
    %127 = arith.divf %126, %123 : vector<64x1xf32>
    %cst_31 = arith.constant 1.000000e+00 : f32
    %128 = vector.broadcast %cst_31 : f32 to vector<64x1xf32>
    %129 = arith.select %125, %127, %128 : vector<64x1xi1>, vector<64x1xf32>
    %130 = vector.broadcast %2 : f32 to vector<64x1xf32>
    %131 = arith.minimumf %123, %130 : vector<64x1xf32>
    %132 = vector.broadcast %1 : f32 to vector<64x1xf32>
    %133 = arith.mulf %132, %131 : vector<64x1xf32>
    %cst_32 = arith.constant -0.99999988 : f32
    %cst_33 = arith.constant 0.99999988 : f32
    %134 = vector.broadcast %cst_32 : f32 to vector<64x1xf32>
    %135 = arith.maximumf %134, %133 : vector<64x1xf32>
    %136 = vector.broadcast %cst_33 : f32 to vector<64x1xf32>
    %137 = arith.minimumf %136, %135 : vector<64x1xf32>
    %cst_34 = arith.constant 1.000000e+00 : f32
    %138 = vector.broadcast %cst_34 : f32 to vector<64x1xf32>
    %139 = arith.addf %138, %137 : vector<64x1xf32>
    %cst_35 = arith.constant 1.000000e+00 : f32
    %140 = vector.broadcast %cst_35 : f32 to vector<64x1xf32>
    %141 = arith.subf %140, %137 : vector<64x1xf32>
    %142 = arith.divf %139, %141 : vector<64x1xf32>
    %143 = math.log %142 : vector<64x1xf32>
    %cst_36 = arith.constant 5.000000e-01 : f32
    %144 = vector.broadcast %cst_36 : f32 to vector<64x1xf32>
    %145 = arith.mulf %144, %143 : vector<64x1xf32>
    %146 = vector.broadcast %1 : f32 to vector<64x1xf32>
    %147 = arith.mulf %146, %131 : vector<64x1xf32>
    %148 = arith.divf %145, %147 : vector<64x1xf32>
    %149 = arith.mulf %129, %148 : vector<64x1xf32>
    %150 = vector.broadcast %149 : vector<64x1xf32> to vector<64x32xf32>
    %151 = arith.mulf %117, %150 : vector<64x32xf32>
    %cst_37 = arith.constant 0.000000e+00 : f32
    %152 = vector.broadcast %cst_37 : f32 to vector<64x32xf32>
    %153 = arith.maximumf %151, %152 : vector<64x32xf32>
    %154 = arith.mulf %153, %153 : vector<64x32xf32>
    %cst_38 = arith.constant dense<0.000000e+00> : vector<64xf32>
    %155 = vector.multi_reduction <add>, %154, %cst_38 [1] : vector<64x32xf32> to vector<64xf32>
    %156 = vector.shape_cast %155 : vector<64xf32> to vector<64x1xf32>
    %157 = math.sqrt %156 : vector<64x1xf32>
    %cst_39 = arith.constant 1.000000e-15 : f32
    %158 = vector.broadcast %cst_39 : f32 to vector<64x1xf32>
    %159 = arith.maximumf %157, %158 : vector<64x1xf32>
    %160 = vector.broadcast %1 : f32 to vector<64x1xf32>
    %161 = arith.mulf %160, %159 : vector<64x1xf32>
    %162 = math.tanh %161 : vector<64x1xf32>
    %163 = vector.broadcast %1 : f32 to vector<64x1xf32>
    %164 = arith.mulf %163, %159 : vector<64x1xf32>
    %165 = arith.divf %162, %164 : vector<64x1xf32>
    %166 = arith.mulf %165, %159 : vector<64x1xf32>
    %cst_40 = arith.constant 1.000000e-15 : f32
    %167 = vector.broadcast %cst_40 : f32 to vector<64x1xf32>
    %168 = arith.maximumf %166, %167 : vector<64x1xf32>
    %169 = vector.broadcast %2 : f32 to vector<64x1xf32>
    %170 = arith.cmpf ogt, %168, %169 : vector<64x1xf32>
    %171 = vector.broadcast %2 : f32 to vector<64x1xf32>
    %172 = arith.divf %171, %168 : vector<64x1xf32>
    %cst_41 = arith.constant 1.000000e+00 : f32
    %173 = vector.broadcast %cst_41 : f32 to vector<64x1xf32>
    %174 = arith.select %170, %172, %173 : vector<64x1xi1>, vector<64x1xf32>
    %175 = arith.mulf %165, %174 : vector<64x1xf32>
    %176 = vector.broadcast %175 : vector<64x1xf32> to vector<64x32xf32>
    %177 = arith.mulf %153, %176 : vector<64x32xf32>
    %c0_42 = arith.constant 0 : index
    %c0_43 = arith.constant 0 : index
    %178 = vector.load %arg5[%c0_42, %c0_43] : memref<64x32xf32, #tpu.memory_space<vmem>>, vector<64x32xf32>
    tpu.vector_store %arg5[%c0_42, %c0_43], %177 {strides = array<i32>} : memref<64x32xf32, #tpu.memory_space<vmem>>, vector<64x32xf32>,
    return
  }
  func.func @transform_0(%arg0: i32) -> i32 {
    %c0_i32 = arith.constant 0 : i32
    %c0_i32_0 = arith.constant 0 : i32
    return %c0_i32 : i32
  }
  func.func @transform_1(%arg0: i32) -> (i32, i32) {
    %c0_i32 = arith.constant 0 : i32
    %c0_i32_0 = arith.constant 0 : i32
    return %arg0, %c0_i32 : i32, i32
  }
  func.func @transform_2(%arg0: i32) -> (i32, i32) {
    %c0_i32 = arith.constant 0 : i32
    %c0_i32_0 = arith.constant 0 : i32
    %c0_i32_1 = arith.constant 0 : i32
    return %c0_i32, %c0_i32_0 : i32, i32
  }
  func.func @transform_3(%arg0: i32) -> (i32, i32) {
    %c0_i32 = arith.constant 0 : i32
    %c0_i32_0 = arith.constant 0 : i32
    %c0_i32_1 = arith.constant 0 : i32
    return %c0_i32, %c0_i32_0 : i32, i32
  }
  func.func @transform_4(%arg0: i32) -> (i32, i32) {
    %c0_i32 = arith.constant 0 : i32
    %c0_i32_0 = arith.constant 0 : i32
    return %arg0, %c0_i32 : i32, i32
  }
}

</mosaic_0001>

<llo_original>
// kernel: tpu_custom_call.1
$region0: #{tpu_custom_call.1}
  #allocation0 [shape = 'u32[]', space=smem, size = 0x4, offset = 0x4, fixed_abs, tag = 'smem constant byte address 0x4 - core index']
  #allocation1 [shape = 'u32[144,128]{1,0:T(1,128)}', space=vmem, size = 0x12000, scoped, tag = 'internal scratch']
  %s0 = inlined_call_operand.vmem [shape: f32[4], index: 0, kind: input, shape index: {}]
  %s1 = inlined_call_operand.vmem [shape: f32[512,32], index: 1, kind: input, shape index: {}]
  %s2 = inlined_call_operand.vmem [shape: f32[32,32], index: 2, kind: input, shape index: {}]
  %s3 = inlined_call_operand.vmem [shape: f32[1,32], index: 3, kind: input, shape index: {}]
  %s4 = inlined_call_operand.vmem [shape: f32[512,32], index: 4, kind: output, shape index: {}]
  %s5 = sld [smem:[#allocation0]]
  $region53: #{tpu_custom_call.1} parent=0
    _
  %s7 = ssub.s32 1, %s5
  %s8 = scalar_select 0, %s7, %s5
  $region1: #{tpu_custom_call.1} parent=0
    #allocation2 [shape = 'u8[512]{0}', space=smem, size = 0x200, scoped, tag = 'input window, operand 0, single buffered']
    #allocation3 [shape = 's32[2]{0}', space=sflag, size = 0x8, scoped, tag = 'scoped memory for tpu_custom_call.1']
    %9 = vsyncpa [#allocation3], 0
    loop: start=0, step=1, limit=10
    $region2: #{tpu_custom_call.1} parent=1 // loop_pre_header
      _
    $region3: #{tpu_custom_call.1} parent=1 // loop_header
      %s11 = sphi 0, %s15
      %p12 = scmp.ge.s32.totalorder %s11, 10
      %s19 = sphi 0, %s19
      %s21 = sphi 0, %s19
      %s22 = sphi 0, %s21
      %s36 = sphi 0, %s22
      %s42 = sphi 0, %s44
      %s45 = sphi 0, %s42
      %s46 = sphi 0, %s45
      %s62 = sphi 0, %s46
      %s66 = sphi 0, %s66
      %s68 = sphi 0, %s66
      %s69 = sphi 0, %s68
      %s83 = sphi 0, %s69
      %s87 = sphi 0, %s87
      %s89 = sphi 0, %s87
      %s90 = sphi 0, %s89
      %s104 = sphi 0, %s90
      %s110 = sphi 0, %s112
      %s113 = sphi 0, %s110
      %s114 = sphi 0, %s113
      %s130 = sphi 0, %s114
    $region4: #{tpu_custom_call.1} parent=1 // loop_header_branch
      %14 = sbr.rel (%p12) target = $region8
    $region5: #{tpu_custom_call.1} parent=1 // loop_body
      %s16 = ssub.s32 %s11, 1
      %s17 = ssub.s32 %s11, 2
      %s18 = sadd.s32 %s11, 1
      %s20 = sadd.s32 %s19, 1
      %p23 = scmp.eq.s32.totalorder %s11, 7
      %p24 = scmp.ne.s32.totalorder %s19, %s21
      %p25 = scmp.eq.s32.totalorder %s11, 0
      %p26 = por %p24, %p25
      %p27 = scmp.ne.s32.totalorder %s19, %s21
      %p28 = scmp.eq.s32.totalorder %s16, 7
      %p29 = por %p27, %p28
      %p30 = scmp.ne.s32.totalorder %s21, %s22
      %p31 = scmp.eq.s32.totalorder %s16, 0
      %p32 = por %p30, %p31
      %p33 = scmp.ne.s32.totalorder %s21, %s22
      %p34 = scmp.eq.s32.totalorder %s17, 7
      %p35 = por %p33, %p34
      %p37 = scmp.ne.s32.totalorder %s22, %s36
      %p38 = scmp.eq.s32.totalorder %s17, 0
      %p39 = por %p37, %p38
      %s40 = ssub.s32 %s11, %s18
      %p41 = scmp.eq.s32.totalorder %s40, 0
      %s43 = sadd.s32 %s42, 1
      %s44 = scalar_select %p41, %s42, %s43
      %p47 = pneg %p41
      %p48 = scmp.eq.s32.totalorder %s11, 7
      %p49 = por %p47, %p48
      %p50 = scmp.ne.s32.totalorder %s42, %s45
      %p51 = scmp.eq.s32.totalorder %s11, 0
      %p52 = por %p50, %p51
      %p53 = scmp.ne.s32.totalorder %s42, %s45
      %p54 = scmp.eq.s32.totalorder %s16, 7
      %p55 = por %p53, %p54
      %p56 = scmp.ne.s32.totalorder %s45, %s46
      %p57 = scmp.eq.s32.totalorder %s16, 0
      %p58 = por %p56, %p57
      %p59 = scmp.ne.s32.totalorder %s45, %s46
      %p60 = scmp.eq.s32.totalorder %s17, 7
      %p61 = por %p59, %p60
      %p63 = scmp.ne.s32.totalorder %s46, %s62
      %p64 = scmp.eq.s32.totalorder %s17, 0
      %p65 = por %p63, %p64
      %s67 = sadd.s32 %s66, 1
      %p70 = scmp.eq.s32.totalorder %s11, 7
      %p71 = scmp.ne.s32.totalorder %s66, %s68
      %p72 = scmp.eq.s32.totalorder %s11, 0
      %p73 = por %p71, %p72
      %p74 = scmp.ne.s32.totalorder %s66, %s68
      %p75 = scmp.eq.s32.totalorder %s16, 7
      %p76 = por %p74, %p75
      %p77 = scmp.ne.s32.totalorder %s68, %s69
      %p78 = scmp.eq.s32.totalorder %s16, 0
      %p79 = por %p77, %p78
      %p80 = scmp.ne.s32.totalorder %s68, %s69
      %p81 = scmp.eq.s32.totalorder %s17, 7
      %p82 = por %p80, %p81
      %p84 = scmp.ne.s32.totalorder %s69, %s83
      %p85 = scmp.eq.s32.totalorder %s17, 0
      %p86 = por %p84, %p85
      %s88 = sadd.s32 %s87, 1
      %p91 = scmp.eq.s32.totalorder %s11, 7
      %p92 = scmp.ne.s32.totalorder %s87, %s89
      %p93 = scmp.eq.s32.totalorder %s11, 0
      %p94 = por %p92, %p93
      %p95 = scmp.ne.s32.totalorder %s87, %s89
      %p96 = scmp.eq.s32.totalorder %s16, 7
      %p97 = por %p95, %p96
      %p98 = scmp.ne.s32.totalorder %s89, %s90
      %p99 = scmp.eq.s32.totalorder %s16, 0
      %p100 = por %p98, %p99
      %p101 = scmp.ne.s32.totalorder %s89, %s90
      %p102 = scmp.eq.s32.totalorder %s17, 7
      %p103 = por %p101, %p102
      %p105 = scmp.ne.s32.totalorder %s90, %s104
      %p106 = scmp.eq.s32.totalorder %s17, 0
      %p107 = por %p105, %p106
      %s108 = ssub.s32 %s11, %s18
      %p109 = scmp.eq.s32.totalorder %s108, 0
      %s111 = sadd.s32 %s110, 1
      %s112 = scalar_select %p109, %s110, %s111
      %p115 = pneg %p109
      %p116 = scmp.eq.s32.totalorder %s11, 7
      %p117 = por %p115, %p116
      %p118 = scmp.ne.s32.totalorder %s110, %s113
      %p119 = scmp.eq.s32.totalorder %s11, 0
      %p120 = por %p118, %p119
      %p121 = scmp.ne.s32.totalorder %s110, %s113
      %p122 = scmp.eq.s32.totalorder %s16, 7
      %p123 = por %p121, %p122
      %p124 = scmp.ne.s32.totalorder %s113, %s114
      %p125 = scmp.eq.s32.totalorder %s16, 0
      %p126 = por %p124, %p125
      %p127 = scmp.ne.s32.totalorder %s113, %s114
      %p128 = scmp.eq.s32.totalorder %s17, 7
      %p129 = por %p127, %p128
      %p131 = scmp.ne.s32.totalorder %s114, %s130
      %p132 = scmp.eq.s32.totalorder %s17, 0
      %p133 = por %p131, %p132
      %p134 = scmp.le.s32.totalorder 1, %s11
      %p135 = scmp.lt.s32.totalorder %s11, 9
      %p136 = pnand %p134, %p135
      %p137 = pneg %p136
      // Predicated region
      $region9: #{tpu_custom_call.1} parent=5 // pred_check
        _
      $region10: #{tpu_custom_call.1} parent=5 // pred_check_branch
        %139 = sbr.rel (%p136) target = $region12
      $region11: #{tpu_custom_call.1} parent=5 // pred_region
        %s140 = ssub.s32 %s11, 1
        // Predicated region
        $region13: #{tpu_custom_call.1} parent=11 // pred_check
          %p141 = pneg %p32
        $region14: #{tpu_custom_call.1} parent=11 // pred_check_branch
          %143 = sbr.rel (%p141) target = $region16
        $region15: #{tpu_custom_call.1} parent=11 // pred_region
          %s145 = ssub.s32 16, 16
          %146 = vsyncadd [#allocation3], %s145
          %s148 = sshll.u32 %s0, 4
          %s149 = int_to_ptr.vmem [resolvable:$true] %s148
          %151 = dma.vmem_to_smem %s149, 16, [#allocation2], [#allocation3]
        $region16: #{tpu_custom_call.1} parent=11 // pred_fallthru
          _
        // Predicated region
        $region17: #{tpu_custom_call.1} parent=11 // pred_check
          %p152 = pneg %p79
        $region18: #{tpu_custom_call.1} parent=11 // pred_check_branch
          %154 = sbr.rel (%p152) target = $region20
        $region19: #{tpu_custom_call.1} parent=11 // pred_region
          _
        $region20: #{tpu_custom_call.1} parent=11 // pred_fallthru
          _
        // Predicated region
        $region21: #{tpu_custom_call.1} parent=11 // pred_check
          %p155 = pneg %p100
        $region22: #{tpu_custom_call.1} parent=11 // pred_check_branch
          %157 = sbr.rel (%p155) target = $region24
        $region23: #{tpu_custom_call.1} parent=11 // pred_region
          _
        $region24: #{tpu_custom_call.1} parent=11 // pred_fallthru
          _
      $region12: #{tpu_custom_call.1} parent=5 // pred_fallthru
        _
      %p158 = scmp.lt.s32.totalorder %s11, 8
      // Predicated region
      $region25: #{tpu_custom_call.1} parent=5 // pred_check
        %p159 = pneg %p158
      $region26: #{tpu_custom_call.1} parent=5 // pred_check_branch
        %161 = sbr.rel (%p159) target = $region28
      $region27: #{tpu_custom_call.1} parent=5 // pred_region
        // Predicated region
        $region29: #{tpu_custom_call.1} parent=27 // pred_check
          %p162 = pneg %p52
        $region30: #{tpu_custom_call.1} parent=27 // pred_check_branch
          %164 = sbr.rel (%p162) target = $region32
        $region31: #{tpu_custom_call.1} parent=27 // pred_region
          %s165 = smul.u32 8, %s11
          %p166 = scmp.lt.s32.totalorder %s165, 63
          %s167 = scalar_select %p166, %s165, 63
          %s168 = smul.addr %s167, 8
          %s169 = scalar_lea.vmem %s1, %s168
          %s170 = smul.u32 8, %s11
        $region32: #{tpu_custom_call.1} parent=27 // pred_fallthru
          _
      $region28: #{tpu_custom_call.1} parent=5 // pred_fallthru
        _
      %p171 = scmp.le.s32.totalorder 1, %s11
      %p172 = scmp.lt.s32.totalorder %s11, 9
      %p173 = pnand %p171, %p172
      %p174 = pneg %p173
      // Predicated region
      $region33: #{tpu_custom_call.1} parent=5 // pred_check
        _
      $region34: #{tpu_custom_call.1} parent=5 // pred_check_branch
        %176 = sbr.rel (%p173) target = $region36
      $region35: #{tpu_custom_call.1} parent=5 // pred_region
        %s177 = ssub.s32 %s11, 1
        // Predicated region
        $region37: #{tpu_custom_call.1} parent=35 // pred_check
          %p178 = pneg %p32
        $region38: #{tpu_custom_call.1} parent=35 // pred_check_branch
          %180 = sbr.rel (%p178) target = $region40
        $region39: #{tpu_custom_call.1} parent=35 // pred_region
          %181 = dma.done [#allocation3], 16
        $region40: #{tpu_custom_call.1} parent=35 // pred_fallthru
          _
        %182 = sfence
        %p183 = pneg %p32
        %p184 = pneg %p29
        %s185 = smul.u32 8, %s16
        %p186 = scmp.lt.s32.totalorder %s185, 63
        %s187 = scalar_select %p186, %s185, 63
        %s188 = smul.addr %s187, 8
        %s189 = scalar_lea.vmem %s1, %s188
        %p190 = pneg %p58
        %p191 = pneg %p55
        %p192 = pneg %p79
        %p193 = pneg %p76
        %p194 = pneg %p100
        %p195 = pneg %p97
        %p196 = pneg %p126
        %p197 = pneg %p123
        %s198 = smul.u32 8, %s16
        %p199 = scmp.lt.s32.totalorder %s198, 63
        %s200 = scalar_select %p199, %s198, 63
        %s201 = smul.addr %s200, 8
        %s202 = scalar_lea.vmem %s4, %s201
        %s203 = smul.u32 8, %s16
        %p204 = scmp.lt.s32.totalorder %s203, 63
        %s205 = scalar_select %p204, %s203, 63
        %s206 = smul.addr %s205, 8
        %s207 = scalar_lea.vmem %s1, %s206
        %s208 = smul.u32 8, %s16
        %s209 = smul.u32 8, %s16
        %p210 = scmp.lt.s32.totalorder %s209, 63
        %s211 = scalar_select %p210, %s209, 63
        %s212 = smul.addr %s211, 8
        %s213 = scalar_lea.vmem %s4, %s212
        %s214 = smul.u32 8, %s16
        %s215 = sld [smem:[#allocation2]]
        %s216 = sld [smem:[#allocation2 + $0x1]]
        %s217 = sld [smem:[#allocation2 + $0x2]]
        %s218 = sld [smem:[#allocation2 + $0x3]]
        %v219 = vld [vmem:[%s207] sm:$0xff]
        %v220 = vld [vmem:[%s207 + $0x8] sm:$0xff]
        %v221 = vld [vmem:[%s207 + $0x10] sm:$0xff]
        %v222 = vld [vmem:[%s207 + $0x18] sm:$0xff]
        %v223 = vld [vmem:[%s207 + $0x20] sm:$0xff]
        %v224 = vld [vmem:[%s207 + $0x28] sm:$0xff]
        %v225 = vld [vmem:[%s207 + $0x30] sm:$0xff]
        %v226 = vld [vmem:[%s207 + $0x38] sm:$0xff]
        %v227 = vmul.f32 %v219, %v219
        %v228 = vmul.f32 %v220, %v220
        %v229 = vmul.f32 %v221, %v221
        %v230 = vmul.f32 %v222, %v222
        %v231 = vmul.f32 %v223, %v223
        %v232 = vmul.f32 %v224, %v224
        %v233 = vmul.f32 %v225, %v225
        %v234 = vmul.f32 %v226, %v226
        %vm235 = vcmask 261120
        %v236 = vsel %vm235, %v227, 0.0
        %237 = vadd.xlane.f32.xlu0 %v236
        %v238 = vpop.xlane.xlu0 %237
        %v239 = vsel %vm235, %v228, 0.0
        %240 = vadd.xlane.f32.xlu0 %v239
        %v241 = vpop.xlane.xlu0 %240
        %v242 = vsel %vm235, %v229, 0.0
        %243 = vadd.xlane.f32.xlu0 %v242
        %v244 = vpop.xlane.xlu0 %243
        %v245 = vsel %vm235, %v230, 0.0
        %246 = vadd.xlane.f32.xlu0 %v245
        %v247 = vpop.xlane.xlu0 %246
        %v248 = vsel %vm235, %v231, 0.0
        %249 = vadd.xlane.f32.xlu0 %v248
        %v250 = vpop.xlane.xlu0 %249
        %v251 = vsel %vm235, %v232, 0.0
        %252 = vadd.xlane.f32.xlu0 %v251
        %v253 = vpop.xlane.xlu0 %252
        %v254 = vsel %vm235, %v233, 0.0
        %255 = vadd.xlane.f32.xlu0 %v254
        %v256 = vpop.xlane.xlu0 %255
        %v257 = vsel %vm235, %v234, 0.0
        %258 = vadd.xlane.f32.xlu0 %v257
        %v259 = vpop.xlane.xlu0 %258
        %v260 = vrsqrt.pop %v238
        %v261 = vmul.f32 %v238, %v260
        %vm262 = vcmp.eq.f32.partialorder %v238, inf
        %v263 = vsel %vm262, %v238, %v261
        %vm264 = vcmp.eq.f32.partialorder %v238, 0.0
        %v265 = vand.u32 %v238, 2147483648
        %v266 = vsel %vm264, %v265, %v263
        %v267 = vrsqrt.pop %v241
        %v268 = vmul.f32 %v241, %v267
        %vm269 = vcmp.eq.f32.partialorder %v241, inf
        %v270 = vsel %vm269, %v241, %v268
        %vm271 = vcmp.eq.f32.partialorder %v241, 0.0
        %v272 = vand.u32 %v241, 2147483648
        %v273 = vsel %vm271, %v272, %v270
        %v274 = vrsqrt.pop %v244
        %v275 = vmul.f32 %v244, %v274
        %vm276 = vcmp.eq.f32.partialorder %v244, inf
        %v277 = vsel %vm276, %v244, %v275
        %vm278 = vcmp.eq.f32.partialorder %v244, 0.0
        %v279 = vand.u32 %v244, 2147483648
        %v280 = vsel %vm278, %v279, %v277
        %v281 = vrsqrt.pop %v247
        %v282 = vmul.f32 %v247, %v281
        %vm283 = vcmp.eq.f32.partialorder %v247, inf
        %v284 = vsel %vm283, %v247, %v282
        %vm285 = vcmp.eq.f32.partialorder %v247, 0.0
        %v286 = vand.u32 %v247, 2147483648
        %v287 = vsel %vm285, %v286, %v284
        %v288 = vrsqrt.pop %v250
        %v289 = vmul.f32 %v250, %v288
        %vm290 = vcmp.eq.f32.partialorder %v250, inf
        %v291 = vsel %vm290, %v250, %v289
        %vm292 = vcmp.eq.f32.partialorder %v250, 0.0
        %v293 = vand.u32 %v250, 2147483648
        %v294 = vsel %vm292, %v293, %v291
        %v295 = vrsqrt.pop %v253
        %v296 = vmul.f32 %v253, %v295
        %vm297 = vcmp.eq.f32.partialorder %v253, inf
        %v298 = vsel %vm297, %v253, %v296
        %vm299 = vcmp.eq.f32.partialorder %v253, 0.0
        %v300 = vand.u32 %v253, 2147483648
        %v301 = vsel %vm299, %v300, %v298
        %v302 = vrsqrt.pop %v256
        %v303 = vmul.f32 %v256, %v302
        %vm304 = vcmp.eq.f32.partialorder %v256, inf
        %v305 = vsel %vm304, %v256, %v303
        %vm306 = vcmp.eq.f32.partialorder %v256, 0.0
        %v307 = vand.u32 %v256, 2147483648
        %v308 = vsel %vm306, %v307, %v305
        %v309 = vrsqrt.pop %v259
        %v310 = vmul.f32 %v259, %v309
        %vm311 = vcmp.eq.f32.partialorder %v259, inf
        %v312 = vsel %vm311, %v259, %v310
        %vm313 = vcmp.eq.f32.partialorder %v259, 0.0
        %v314 = vand.u32 %v259, 2147483648
        %v315 = vsel %vm313, %v314, %v312
        %v316 = vmax.f32 %v266, 1e-15
        %v317 = vmax.f32 %v273, 1e-15
        %v318 = vmax.f32 %v280, 1e-15
        %v319 = vmax.f32 %v287, 1e-15
        %v320 = vmax.f32 %v294, 1e-15
        %v321 = vmax.f32 %v301, 1e-15
        %v322 = vmax.f32 %v308, 1e-15
        %v323 = vmax.f32 %v315, 1e-15
        %v324 = vstv %s216
        %v325 = vmul.f32 %v324, %v316
        %v326 = vmul.f32 %v324, %v317
        %v327 = vmul.f32 %v324, %v318
        %v328 = vmul.f32 %v324, %v319
        %v329 = vmul.f32 %v324, %v320
        %v330 = vmul.f32 %v324, %v321
        %v331 = vmul.f32 %v324, %v322
        %v332 = vmul.f32 %v324, %v323
        %v333 = vtanh.pop %v325
        %v334 = vtanh.pop %v326
        %v335 = vtanh.pop %v327
        %v336 = vtanh.pop %v328
        %v337 = vtanh.pop %v329
        %v338 = vtanh.pop %v330
        %v339 = vtanh.pop %v331
        %v340 = vtanh.pop %v332
        %v341 = vrcp.pop %v325
        %v342 = vmul.f32 %v333, %v341
        %v343 = vrcp.pop %v326
        %v344 = vmul.f32 %v334, %v343
        %v345 = vrcp.pop %v327
        %v346 = vmul.f32 %v335, %v345
        %v347 = vrcp.pop %v328
        %v348 = vmul.f32 %v336, %v347
        %v349 = vrcp.pop %v329
        %v350 = vmul.f32 %v337, %v349
        %v351 = vrcp.pop %v330
        %v352 = vmul.f32 %v338, %v351
        %v353 = vrcp.pop %v331
        %v354 = vmul.f32 %v339, %v353
        %v355 = vrcp.pop %v332
        %v356 = vmul.f32 %v340, %v355
        %v357 = vmul.f32 %v342, %v316
        %v358 = vmul.f32 %v344, %v317
        %v359 = vmul.f32 %v346, %v318
        %v360 = vmul.f32 %v348, %v319
        %v361 = vmul.f32 %v350, %v320
        %v362 = vmul.f32 %v352, %v321
        %v363 = vmul.f32 %v354, %v322
        %v364 = vmul.f32 %v356, %v323
        %v365 = vmax.f32 %v357, 1e-15
        %v366 = vmax.f32 %v358, 1e-15
        %v367 = vmax.f32 %v359, 1e-15
        %v368 = vmax.f32 %v360, 1e-15
        %v369 = vmax.f32 %v361, 1e-15
        %v370 = vmax.f32 %v362, 1e-15
        %v371 = vmax.f32 %v363, 1e-15
        %v372 = vmax.f32 %v364, 1e-15
        %v373 = vstv %s217
        %vm374 = vcmp.gt.f32.partialorder %v365, %v373
        %vm375 = vcmp.gt.f32.partialorder %v366, %v373
        %vm376 = vcmp.gt.f32.partialorder %v367, %v373
        %vm377 = vcmp.gt.f32.partialorder %v368, %v373
        %vm378 = vcmp.gt.f32.partialorder %v369, %v373
        %vm379 = vcmp.gt.f32.partialorder %v370, %v373
        %vm380 = vcmp.gt.f32.partialorder %v371, %v373
        %vm381 = vcmp.gt.f32.partialorder %v372, %v373
        %v382 = vrcp.pop %v365
        %v383 = vmul.f32 %v373, %v382
        %v384 = vrcp.pop %v366
        %v385 = vmul.f32 %v373, %v384
        %v386 = vrcp.pop %v367
        %v387 = vmul.f32 %v373, %v386
        %v388 = vrcp.pop %v368
        %v389 = vmul.f32 %v373, %v388
        %v390 = vrcp.pop %v369
        %v391 = vmul.f32 %v373, %v390
        %v392 = vrcp.pop %v370
        %v393 = vmul.f32 %v373, %v392
        %v394 = vrcp.pop %v371
        %v395 = vmul.f32 %v373, %v394
        %v396 = vrcp.pop %v372
        %v397 = vmul.f32 %v373, %v396
        %v398 = vsel %vm374, %v383, 1.0
        %v399 = vsel %vm375, %v385, 1.0
        %v400 = vsel %vm376, %v387, 1.0
        %v401 = vsel %vm377, %v389, 1.0
        %v402 = vsel %vm378, %v391, 1.0
        %v403 = vsel %vm379, %v393, 1.0
        %v404 = vsel %vm380, %v395, 1.0
        %v405 = vsel %vm381, %v397, 1.0
        %v406 = vmul.f32 %v342, %v398
        %v407 = vmul.f32 %v344, %v399
        %v408 = vmul.f32 %v346, %v400
        %v409 = vmul.f32 %v348, %v401
        %v410 = vmul.f32 %v350, %v402
        %v411 = vmul.f32 %v352, %v403
        %v412 = vmul.f32 %v354, %v404
        %v413 = vmul.f32 %v356, %v405
        %v414 = vmul.f32 %v219, %v406
        %v415 = vmul.f32 %v220, %v407
        %v416 = vmul.f32 %v221, %v408
        %v417 = vmul.f32 %v222, %v409
        %v418 = vmul.f32 %v223, %v410
        %v419 = vmul.f32 %v224, %v411
        %v420 = vmul.f32 %v225, %v412
        %v421 = vmul.f32 %v226, %v413
        %v422 = vmin.f32 %v365, %v373
        %v423 = vmin.f32 %v366, %v373
        %v424 = vmin.f32 %v367, %v373
        %v425 = vmin.f32 %v368, %v373
        %v426 = vmin.f32 %v369, %v373
        %v427 = vmin.f32 %v370, %v373
        %v428 = vmin.f32 %v371, %v373
        %v429 = vmin.f32 %v372, %v373
        %v430 = vld [vmem:[%s2] sm:$0xff]
        %v431 = vld [vmem:[%s2 + $0x8] sm:$0xff]
        %v432 = vld [vmem:[%s2 + $0x10] sm:$0xff]
        %v433 = vld [vmem:[%s2 + $0x18] sm:$0xff]
        %v435 = vsel %vm235, %v414, 0
        %v438 = vsel %vm235, %v415, 0
        %v441 = vsel %vm235, %v416, 0
        %v444 = vsel %vm235, %v417, 0
        %v447 = vsel %vm235, %v418, 0
        %v450 = vsel %vm235, %v419, 0
        %v453 = vsel %vm235, %v420, 0
        %v456 = vsel %vm235, %v421, 0
        %458 = vmatprep.subr.mxu0 0.0
        %v459 = vand.u32 %v430, 4294901760
        %460 = vmatpush1.msra.mxu0 %v459
        %461 = vmatprep.subr.mxu0 0.0
        %v462 = vand.u32 %v431, 4294901760
        %463 = vmatpush1.msra.mxu0 %v462
        %464 = vmatprep.subr.mxu0 0.0
        %v465 = vand.u32 %v432, 4294901760
        %466 = vmatpush1.msra.mxu0 %v465
        %467 = vmatprep.subr.mxu0 0.0
        %v468 = vand.u32 %v433, 4294901760
        %469 = vmatpush1.msra.mxu0 %v468
        %470 = vmatprep.subr.mxu0 0.0
        %471 = vmatpush1.msra.mxu0 0.0
        %472 = vmatprep.subr.mxu0 0.0
        %473 = vmatpush1.msra.mxu0 0.0
        %474 = vmatprep.subr.mxu0 0.0
        %475 = vmatpush1.msra.mxu0 0.0
        %476 = vmatprep.subr.mxu0 0.0
        %477 = vmatpush1.msra.mxu0 0.0
        %478 = vmatprep.subr.mxu0 0.0
        %479 = vmatpush1.msra.mxu0 0.0
        %480 = vmatprep.subr.mxu0 0.0
        %481 = vmatpush1.msra.mxu0 0.0
        %482 = vmatprep.subr.mxu0 0.0
        %483 = vmatpush1.msra.mxu0 0.0
        %484 = vmatprep.subr.mxu0 0.0
        %485 = vmatpush1.msra.mxu0 0.0
        %486 = vmatprep.subr.mxu0 0.0
        %487 = vmatpush1.msra.mxu0 0.0
        %488 = vmatprep.subr.mxu0 0.0
        %489 = vmatpush1.msra.mxu0 0.0
        %490 = vmatprep.subr.mxu0 0.0
        %491 = vmatpush1.msra.mxu0 0.0
        %492 = vmatprep.subr.mxu0 0.0
        %493 = vmatpush1.msra.mxu0 0.0
        %494 = vmatprep.subr.mxu0 0.0
        %495 = vmatpush1.msra.mxu0 0.0
        %496 = vmatprep.subr.mxu0 0.0
        %497 = vmatpush1.msra.mxu0 0.0
        %498 = vmatprep.subr.mxu0 0.0
        %499 = vmatpush1.msra.mxu0 0.0
        %500 = vmatprep.subr.mxu0 0.0
        %501 = vmatpush1.msra.mxu0 0.0
        %502 = vmatprep.subr.mxu0 0.0
        %503 = vmatpush1.msra.mxu0 0.0
        %504 = vmatprep.subr.mxu0 0.0
        %505 = vmatpush1.msra.mxu0 0.0
        %506 = vmatprep.subr.mxu0 0.0
        %507 = vmatpush1.msra.mxu0 0.0
        %508 = vmatprep.subr.mxu0 0.0
        %509 = vmatpush1.msra.mxu0 0.0
        %510 = vmatprep.subr.mxu0 0.0
        %511 = vmatpush1.msra.mxu0 0.0
        %512 = vmatprep.subr.mxu0 0.0
        %513 = vmatpush1.msra.mxu0 0.0
        %514 = vmatprep.subr.mxu0 0.0
        %515 = vmatpush1.msra.mxu0 0.0
        %516 = vmatprep.subr.mxu0 0.0
        %517 = vmatpush1.msra.mxu0 0.0
        %518 = vmatprep.subr.mxu0 0.0
        %519 = vmatpush1.msra.mxu0 0.0
        %520 = vmatprep.subr.mxu0 0.0
        %521 = vmatpush1.msra.mxu0 0.0
        %522 = vmatprep.subr.mxu0 0.0
        %523 = vmatpush1.msra.mxu0 0.0
        %524 = vmatprep.subr.mxu0 0.0
        %525 = vmatpush1.msra.mxu0 0.0
        %526 = vmatprep.mubr.f32.mxu0 0.0
        %v527 = vand.u32 %v435, 4294901760
        %v528 = vsub.f32 %v435, %v527
        %v529 = vand.u32 %v528, 4294901760
        %v530 = vsub.f32 %v528, %v529
        %v531 = vand.u32 %v530, 4294901760
        %532 = vmatmul.mubr.f32.gmra.mrb[0].mxu0 %v531
        %v533 = vpop.f32.mrb[0].mxu0
        %v534 = vadd.f32 0.0, %v533
        %v535 = vpop.f32.mrb[0].mxu0
        %536 = vmatprep.mubr.f32.mxu0 0.0
        %v537 = vand.u32 %v438, 4294901760
        %v538 = vsub.f32 %v438, %v537
        %v539 = vand.u32 %v538, 4294901760
        %v540 = vsub.f32 %v538, %v539
        %v541 = vand.u32 %v540, 4294901760
        %542 = vmatmul.mubr.f32.gmra.mrb[0].mxu0 %v541
        %v543 = vpop.f32.mrb[0].mxu0
        %v544 = vadd.f32 0.0, %v543
        %v545 = vpop.f32.mrb[0].mxu0
        %546 = vmatprep.mubr.f32.mxu0 0.0
        %v547 = vand.u32 %v441, 4294901760
        %v548 = vsub.f32 %v441, %v547
        %v549 = vand.u32 %v548, 4294901760
        %v550 = vsub.f32 %v548, %v549
        %v551 = vand.u32 %v550, 4294901760
        %552 = vmatmul.mubr.f32.gmra.mrb[0].mxu0 %v551
        %v553 = vpop.f32.mrb[0].mxu0
        %v554 = vadd.f32 0.0, %v553
        %v555 = vpop.f32.mrb[0].mxu0
        %556 = vmatprep.mubr.f32.mxu0 0.0
        %v557 = vand.u32 %v444, 4294901760
        %v558 = vsub.f32 %v444, %v557
        %v559 = vand.u32 %v558, 4294901760
        %v560 = vsub.f32 %v558, %v559
        %v561 = vand.u32 %v560, 4294901760
        %562 = vmatmul.mubr.f32.gmra.mrb[0].mxu0 %v561
        %v563 = vpop.f32.mrb[0].mxu0
        %v564 = vadd.f32 0.0, %v563
        %v565 = vpop.f32.mrb[0].mxu0
        %566 = vmatprep.mubr.f32.mxu0 0.0
        %v567 = vand.u32 %v447, 4294901760
        %v568 = vsub.f32 %v447, %v567
        %v569 = vand.u32 %v568, 4294901760
        %v570 = vsub.f32 %v568, %v569
        %v571 = vand.u32 %v570, 4294901760
        %572 = vmatmul.mubr.f32.gmra.mrb[0].mxu0 %v571
        %v573 = vpop.f32.mrb[0].mxu0
        %v574 = vadd.f32 0.0, %v573
        %v575 = vpop.f32.mrb[0].mxu0
        %576 = vmatprep.mubr.f32.mxu0 0.0
        %v577 = vand.u32 %v450, 4294901760
        %v578 = vsub.f32 %v450, %v577
        %v579 = vand.u32 %v578, 4294901760
        %v580 = vsub.f32 %v578, %v579
        %v581 = vand.u32 %v580, 4294901760
        %582 = vmatmul.mubr.f32.gmra.mrb[0].mxu0 %v581
        %v583 = vpop.f32.mrb[0].mxu0
        %v584 = vadd.f32 0.0, %v583
        %v585 = vpop.f32.mrb[0].mxu0
        %586 = vmatprep.mubr.f32.mxu0 0.0
        %v587 = vand.u32 %v453, 4294901760
        %v588 = vsub.f32 %v453, %v587
        %v589 = vand.u32 %v588, 4294901760
        %v590 = vsub.f32 %v588, %v589
        %v591 = vand.u32 %v590, 4294901760
        %592 = vmatmul.mubr.f32.gmra.mrb[0].mxu0 %v591
        %v593 = vpop.f32.mrb[0].mxu0
        %v594 = vadd.f32 0.0, %v593
        %v595 = vpop.f32.mrb[0].mxu0
        %596 = vmatprep.mubr.f32.mxu0 0.0
        %v597 = vand.u32 %v456, 4294901760
        %v598 = vsub.f32 %v456, %v597
        %v599 = vand.u32 %v598, 4294901760
        %v600 = vsub.f32 %v598, %v599
        %v601 = vand.u32 %v600, 4294901760
        %602 = vmatmul.mubr.f32.gmra.mrb[0].mxu0 %v601
        %v603 = vpop.f32.mrb[0].mxu0
        %v604 = vadd.f32 0.0, %v603
        %v605 = vpop.f32.mrb[0].mxu0
        %606 = vdwg.mxu0
        %607 = vmatprep.subr.mxu0 0.0
        %v608 = vand.u32 %v430, 4294901760
        %v609 = vsub.f32 %v430, %v608
        %v610 = vand.u32 %v609, 4294901760
        %v611 = vsub.f32 %v609, %v610
        %v612 = vand.u32 %v611, 4294901760
        %613 = vmatpush1.msra.mxu0 %v612
        %614 = vmatprep.subr.mxu0 0.0
        %v615 = vand.u32 %v431, 4294901760
        %v616 = vsub.f32 %v431, %v615
        %v617 = vand.u32 %v616, 4294901760
        %v618 = vsub.f32 %v616, %v617
        %v619 = vand.u32 %v618, 4294901760
        %620 = vmatpush1.msra.mxu0 %v619
        %621 = vmatprep.subr.mxu0 0.0
        %v622 = vand.u32 %v432, 4294901760
        %v623 = vsub.f32 %v432, %v622
        %v624 = vand.u32 %v623, 4294901760
        %v625 = vsub.f32 %v623, %v624
        %v626 = vand.u32 %v625, 4294901760
        %627 = vmatpush1.msra.mxu0 %v626
        %628 = vmatprep.subr.mxu0 0.0
        %v629 = vand.u32 %v433, 4294901760
        %v630 = vsub.f32 %v433, %v629
        %v631 = vand.u32 %v630, 4294901760
        %v632 = vsub.f32 %v630, %v631
        %v633 = vand.u32 %v632, 4294901760
        %634 = vmatpush1.msra.mxu0 %v633
        %635 = vmatprep.subr.mxu0 0.0
        %636 = vmatpush1.msra.mxu0 0.0
        %637 = vmatprep.subr.mxu0 0.0
        %638 = vmatpush1.msra.mxu0 0.0
        %639 = vmatprep.subr.mxu0 0.0
        %640 = vmatpush1.msra.mxu0 0.0
        %641 = vmatprep.subr.mxu0 0.0
        %642 = vmatpush1.msra.mxu0 0.0
        %643 = vmatprep.subr.mxu0 0.0
        %644 = vmatpush1.msra.mxu0 0.0
        %645 = vmatprep.subr.mxu0 0.0
        %646 = vmatpush1.msra.mxu0 0.0
        %647 = vmatprep.subr.mxu0 0.0
        %648 = vmatpush1.msra.mxu0 0.0
        %649 = vmatprep.subr.mxu0 0.0
        %650 = vmatpush1.msra.mxu0 0.0
        %651 = vmatprep.subr.mxu0 0.0
        %652 = vmatpush1.msra.mxu0 0.0
        %653 = vmatprep.subr.mxu0 0.0
        %654 = vmatpush1.msra.mxu0 0.0
        %655 = vmatprep.subr.mxu0 0.0
        %656 = vmatpush1.msra.mxu0 0.0
        %657 = vmatprep.subr.mxu0 0.0
        %658 = vmatpush1.msra.mxu0 0.0
        %659 = vmatprep.subr.mxu0 0.0
        %660 = vmatpush1.msra.mxu0 0.0
        %661 = vmatprep.subr.mxu0 0.0
        %662 = vmatpush1.msra.mxu0 0.0
        %663 = vmatprep.subr.mxu0 0.0
        %664 = vmatpush1.msra.mxu0 0.0
        %665 = vmatprep.subr.mxu0 0.0
        %666 = vmatpush1.msra.mxu0 0.0
        %667 = vmatprep.subr.mxu0 0.0
        %668 = vmatpush1.msra.mxu0 0.0
        %669 = vmatprep.subr.mxu0 0.0
        %670 = vmatpush1.msra.mxu0 0.0
        %671 = vmatprep.subr.mxu0 0.0
        %672 = vmatpush1.msra.mxu0 0.0
        %673 = vmatprep.subr.mxu0 0.0
        %674 = vmatpush1.msra.mxu0 0.0
        %675 = vmatprep.subr.mxu0 0.0
        %676 = vmatpush1.msra.mxu0 0.0
        %677 = vmatprep.subr.mxu0 0.0
        %678 = vmatpush1.msra.mxu0 0.0
        %679 = vmatprep.subr.mxu0 0.0
        %680 = vmatpush1.msra.mxu0 0.0
        %681 = vmatprep.subr.mxu0 0.0
        %682 = vmatpush1.msra.mxu0 0.0
        %683 = vmatprep.subr.mxu0 0.0
        %684 = vmatpush1.msra.mxu0 0.0
        %685 = vmatprep.subr.mxu0 0.0
        %686 = vmatpush1.msra.mxu0 0.0
        %687 = vmatprep.subr.mxu0 0.0
        %688 = vmatpush1.msra.mxu0 0.0
        %689 = vmatprep.subr.mxu0 0.0
        %690 = vmatpush1.msra.mxu0 0.0
        %691 = vmatprep.mubr.f32.mxu0 0.0
        %v692 = vand.u32 %v435, 4294901760
        %693 = vmatmul.mubr.f32.gmra.mrb[0].mxu0 %v692
        %v694 = vpop.f32.mrb[0].mxu0
        %v695 = vadd.f32 %v534, %v694
        %v696 = vpop.f32.mrb[0].mxu0
        %697 = vmatprep.mubr.f32.mxu0 0.0
        %v698 = vand.u32 %v438, 4294901760
        %699 = vmatmul.mubr.f32.gmra.mrb[0].mxu0 %v698
        %v700 = vpop.f32.mrb[0].mxu0
        %v701 = vadd.f32 %v544, %v700
        %v702 = vpop.f32.mrb[0].mxu0
        %703 = vmatprep.mubr.f32.mxu0 0.0
        %v704 = vand.u32 %v441, 4294901760
        %705 = vmatmul.mubr.f32.gmra.mrb[0].mxu0 %v704
        %v706 = vpop.f32.mrb[0].mxu0
        %v707 = vadd.f32 %v554, %v706
        %v708 = vpop.f32.mrb[0].mxu0
        %709 = vmatprep.mubr.f32.mxu0 0.0
        %v710 = vand.u32 %v444, 4294901760
        %711 = vmatmul.mubr.f32.gmra.mrb[0].mxu0 %v710
        %v712 = vpop.f32.mrb[0].mxu0
        %v713 = vadd.f32 %v564, %v712
        %v714 = vpop.f32.mrb[0].mxu0
        %715 = vmatprep.mubr.f32.mxu0 0.0
        %v716 = vand.u32 %v447, 4294901760
        %717 = vmatmul.mubr.f32.gmra.mrb[0].mxu0 %v716
        %v718 = vpop.f32.mrb[0].mxu0
        %v719 = vadd.f32 %v574, %v718
        %v720 = vpop.f32.mrb[0].mxu0
        %721 = vmatprep.mubr.f32.mxu0 0.0
        %v722 = vand.u32 %v450, 4294901760
        %723 = vmatmul.mubr.f32.gmra.mrb[0].mxu0 %v722
        %v724 = vpop.f32.mrb[0].mxu0
        %v725 = vadd.f32 %v584, %v724
        %v726 = vpop.f32.mrb[0].mxu0
        %727 = vmatprep.mubr.f32.mxu0 0.0
        %v728 = vand.u32 %v453, 4294901760
        %729 = vmatmul.mubr.f32.gmra.mrb[0].mxu0 %v728
        %v730 = vpop.f32.mrb[0].mxu0
        %v731 = vadd.f32 %v594, %v730
        %v732 = vpop.f32.mrb[0].mxu0
        %733 = vmatprep.mubr.f32.mxu0 0.0
        %v734 = vand.u32 %v456, 4294901760
        %735 = vmatmul.mubr.f32.gmra.mrb[0].mxu0 %v734
        %v736 = vpop.f32.mrb[0].mxu0
        %v737 = vadd.f32 %v604, %v736
        %v738 = vpop.f32.mrb[0].mxu0
        %739 = vdwg.mxu0
        %740 = vmatprep.subr.mxu0 0.0
        %v741 = vand.u32 %v430, 4294901760
        %v742 = vsub.f32 %v430, %v741
        %743 = vmatpush1.msra.mxu0 %v742
        %744 = vmatprep.subr.mxu0 0.0
        %v745 = vand.u32 %v431, 4294901760
        %v746 = vsub.f32 %v431, %v745
        %747 = vmatpush1.msra.mxu0 %v746
        %748 = vmatprep.subr.mxu0 0.0
        %v749 = vand.u32 %v432, 4294901760
        %v750 = vsub.f32 %v432, %v749
        %751 = vmatpush1.msra.mxu0 %v750
        %752 = vmatprep.subr.mxu0 0.0
        %v753 = vand.u32 %v433, 4294901760
        %v754 = vsub.f32 %v433, %v753
        %755 = vmatpush1.msra.mxu0 %v754
        %756 = vmatprep.subr.mxu0 0.0
        %757 = vmatpush1.msra.mxu0 0.0
        %758 = vmatprep.subr.mxu0 0.0
        %759 = vmatpush1.msra.mxu0 0.0
        %760 = vmatprep.subr.mxu0 0.0
        %761 = vmatpush1.msra.mxu0 0.0
        %762 = vmatprep.subr.mxu0 0.0
        %763 = vmatpush1.msra.mxu0 0.0
        %764 = vmatprep.subr.mxu0 0.0
        %765 = vmatpush1.msra.mxu0 0.0
        %766 = vmatprep.subr.mxu0 0.0
        %767 = vmatpush1.msra.mxu0 0.0
        %768 = vmatprep.subr.mxu0 0.0
        %769 = vmatpush1.msra.mxu0 0.0
        %770 = vmatprep.subr.mxu0 0.0
        %771 = vmatpush1.msra.mxu0 0.0
        %772 = vmatprep.subr.mxu0 0.0
        %773 = vmatpush1.msra.mxu0 0.0
        %774 = vmatprep.subr.mxu0 0.0
        %775 = vmatpush1.msra.mxu0 0.0
        %776 = vmatprep.subr.mxu0 0.0
        %777 = vmatpush1.msra.mxu0 0.0
        %778 = vmatprep.subr.mxu0 0.0
        %779 = vmatpush1.msra.mxu0 0.0
        %780 = vmatprep.subr.mxu0 0.0
        %781 = vmatpush1.msra.mxu0 0.0
        %782 = vmatprep.subr.mxu0 0.0
        %783 = vmatpush1.msra.mxu0 0.0
        %784 = vmatprep.subr.mxu0 0.0
        %785 = vmatpush1.msra.mxu0 0.0
        %786 = vmatprep.subr.mxu0 0.0
        %787 = vmatpush1.msra.mxu0 0.0
        %788 = vmatprep.subr.mxu0 0.0
        %789 = vmatpush1.msra.mxu0 0.0
        %790 = vmatprep.subr.mxu0 0.0
        %791 = vmatpush1.msra.mxu0 0.0
        %792 = vmatprep.subr.mxu0 0.0
        %793 = vmatpush1.msra.mxu0 0.0
        %794 = vmatprep.subr.mxu0 0.0
        %795 = vmatpush1.msra.mxu0 0.0
        %796 = vmatprep.subr.mxu0 0.0
        %797 = vmatpush1.msra.mxu0 0.0
        %798 = vmatprep.subr.mxu0 0.0
        %799 = vmatpush1.msra.mxu0 0.0
        %800 = vmatprep.subr.mxu0 0.0
        %801 = vmatpush1.msra.mxu0 0.0
        %802 = vmatprep.subr.mxu0 0.0
        %803 = vmatpush1.msra.mxu0 0.0
        %804 = vmatprep.subr.mxu0 0.0
        %805 = vmatpush1.msra.mxu0 0.0
        %806 = vmatprep.subr.mxu0 0.0
        %807 = vmatpush1.msra.mxu0 0.0
        %808 = vmatprep.subr.mxu0 0.0
        %809 = vmatpush1.msra.mxu0 0.0
        %810 = vmatprep.subr.mxu0 0.0
        %811 = vmatpush1.msra.mxu0 0.0
        %812 = vmatprep.mubr.f32.mxu0 0.0
        %v813 = vand.u32 %v435, 4294901760
        %v814 = vsub.f32 %v435, %v813
        %815 = vmatmul.mubr.f32.gmra.mrb[0].mxu0 %v814
        %v816 = vpop.f32.mrb[0].mxu0
        %v817 = vadd.f32 %v695, %v816
        %v818 = vpop.f32.mrb[0].mxu0
        %819 = vmatprep.mubr.f32.mxu0 0.0
        %v820 = vand.u32 %v438, 4294901760
        %v821 = vsub.f32 %v438, %v820
        %822 = vmatmul.mubr.f32.gmra.mrb[0].mxu0 %v821
        %v823 = vpop.f32.mrb[0].mxu0
        %v824 = vadd.f32 %v701, %v823
        %v825 = vpop.f32.mrb[0].mxu0
        %826 = vmatprep.mubr.f32.mxu0 0.0
        %v827 = vand.u32 %v441, 4294901760
        %v828 = vsub.f32 %v441, %v827
        %829 = vmatmul.mubr.f32.gmra.mrb[0].mxu0 %v828
        %v830 = vpop.f32.mrb[0].mxu0
        %v831 = vadd.f32 %v707, %v830
        %v832 = vpop.f32.mrb[0].mxu0
        %833 = vmatprep.mubr.f32.mxu0 0.0
        %v834 = vand.u32 %v444, 4294901760
        %v835 = vsub.f32 %v444, %v834
        %836 = vmatmul.mubr.f32.gmra.mrb[0].mxu0 %v835
        %v837 = vpop.f32.mrb[0].mxu0
        %v838 = vadd.f32 %v713, %v837
        %v839 = vpop.f32.mrb[0].mxu0
        %840 = vmatprep.mubr.f32.mxu0 0.0
        %v841 = vand.u32 %v447, 4294901760
        %v842 = vsub.f32 %v447, %v841
        %843 = vmatmul.mubr.f32.gmra.mrb[0].mxu0 %v842
        %v844 = vpop.f32.mrb[0].mxu0
        %v845 = vadd.f32 %v719, %v844
        %v846 = vpop.f32.mrb[0].mxu0
        %847 = vmatprep.mubr.f32.mxu0 0.0
        %v848 = vand.u32 %v450, 4294901760
        %v849 = vsub.f32 %v450, %v848
        %850 = vmatmul.mubr.f32.gmra.mrb[0].mxu0 %v849
        %v851 = vpop.f32.mrb[0].mxu0
        %v852 = vadd.f32 %v725, %v851
        %v853 = vpop.f32.mrb[0].mxu0
        %854 = vmatprep.mubr.f32.mxu0 0.0
        %v855 = vand.u32 %v453, 4294901760
        %v856 = vsub.f32 %v453, %v855
        %857 = vmatmul.mubr.f32.gmra.mrb[0].mxu0 %v856
        %v858 = vpop.f32.mrb[0].mxu0
        %v859 = vadd.f32 %v731, %v858
        %v860 = vpop.f32.mrb[0].mxu0
        %861 = vmatprep.mubr.f32.mxu0 0.0
        %v862 = vand.u32 %v456, 4294901760
        %v863 = vsub.f32 %v456, %v862
        %864 = vmatmul.mubr.f32.gmra.mrb[0].mxu0 %v863
        %v865 = vpop.f32.mrb[0].mxu0
        %v866 = vadd.f32 %v737, %v865
        %v867 = vpop.f32.mrb[0].mxu0
        %868 = vdwg.mxu0
        %869 = vmatprep.subr.mxu0 0.0
        %v870 = vand.u32 %v430, 4294901760
        %871 = vmatpush1.msra.mxu0 %v870
        %872 = vmatprep.subr.mxu0 0.0
        %v873 = vand.u32 %v431, 4294901760
        %874 = vmatpush1.msra.mxu0 %v873
        %875 = vmatprep.subr.mxu0 0.0
        %v876 = vand.u32 %v432, 4294901760
        %877 = vmatpush1.msra.mxu0 %v876
        %878 = vmatprep.subr.mxu0 0.0
        %v879 = vand.u32 %v433, 4294901760
        %880 = vmatpush1.msra.mxu0 %v879
        %881 = vmatprep.subr.mxu0 0.0
        %882 = vmatpush1.msra.mxu0 0.0
        %883 = vmatprep.subr.mxu0 0.0
        %884 = vmatpush1.msra.mxu0 0.0
        %885 = vmatprep.subr.mxu0 0.0
        %886 = vmatpush1.msra.mxu0 0.0
        %887 = vmatprep.subr.mxu0 0.0
        %888 = vmatpush1.msra.mxu0 0.0
        %889 = vmatprep.subr.mxu0 0.0
        %890 = vmatpush1.msra.mxu0 0.0
        %891 = vmatprep.subr.mxu0 0.0
        %892 = vmatpush1.msra.mxu0 0.0
        %893 = vmatprep.subr.mxu0 0.0
        %894 = vmatpush1.msra.mxu0 0.0
        %895 = vmatprep.subr.mxu0 0.0
        %896 = vmatpush1.msra.mxu0 0.0
        %897 = vmatprep.subr.mxu0 0.0
        %898 = vmatpush1.msra.mxu0 0.0
        %899 = vmatprep.subr.mxu0 0.0
        %900 = vmatpush1.msra.mxu0 0.0
        %901 = vmatprep.subr.mxu0 0.0
        %902 = vmatpush1.msra.mxu0 0.0
        %903 = vmatprep.subr.mxu0 0.0
        %904 = vmatpush1.msra.mxu0 0.0
        %905 = vmatprep.subr.mxu0 0.0
        %906 = vmatpush1.msra.mxu0 0.0
        %907 = vmatprep.subr.mxu0 0.0
        %908 = vmatpush1.msra.mxu0 0.0
        %909 = vmatprep.subr.mxu0 0.0
        %910 = vmatpush1.msra.mxu0 0.0
        %911 = vmatprep.subr.mxu0 0.0
        %912 = vmatpush1.msra.mxu0 0.0
        %913 = vmatprep.subr.mxu0 0.0
        %914 = vmatpush1.msra.mxu0 0.0
        %915 = vmatprep.subr.mxu0 0.0
        %916 = vmatpush1.msra.mxu0 0.0
        %917 = vmatprep.subr.mxu0 0.0
        %918 = vmatpush1.msra.mxu0 0.0
        %919 = vmatprep.subr.mxu0 0.0
        %920 = vmatpush1.msra.mxu0 0.0
        %921 = vmatprep.subr.mxu0 0.0
        %922 = vmatpush1.msra.mxu0 0.0
        %923 = vmatprep.subr.mxu0 0.0
        %924 = vmatpush1.msra.mxu0 0.0
        %925 = vmatprep.subr.mxu0 0.0
        %926 = vmatpush1.msra.mxu0 0.0
        %927 = vmatprep.subr.mxu0 0.0
        %928 = vmatpush1.msra.mxu0 0.0
        %929 = vmatprep.subr.mxu0 0.0
        %930 = vmatpush1.msra.mxu0 0.0
        %931 = vmatprep.subr.mxu0 0.0
        %932 = vmatpush1.msra.mxu0 0.0
        %933 = vmatprep.subr.mxu0 0.0
        %934 = vmatpush1.msra.mxu0 0.0
        %935 = vmatprep.subr.mxu0 0.0
        %936 = vmatpush1.msra.mxu0 0.0
        %937 = vmatprep.mubr.f32.mxu0 0.0
        %v938 = vand.u32 %v435, 4294901760
        %v939 = vsub.f32 %v435, %v938
        %v940 = vand.u32 %v939, 4294901760
        %941 = vmatmul.mubr.f32.gmra.mrb[0].mxu0 %v940
        %v942 = vpop.f32.mrb[0].mxu0
        %v943 = vadd.f32 %v817, %v942
        %v944 = vpop.f32.mrb[0].mxu0
        %945 = vmatprep.mubr.f32.mxu0 0.0
        %v946 = vand.u32 %v438, 4294901760
        %v947 = vsub.f32 %v438, %v946
        %v948 = vand.u32 %v947, 4294901760
        %949 = vmatmul.mubr.f32.gmra.mrb[0].mxu0 %v948
        %v950 = vpop.f32.mrb[0].mxu0
        %v951 = vadd.f32 %v824, %v950
        %v952 = vpop.f32.mrb[0].mxu0
        %953 = vmatprep.mubr.f32.mxu0 0.0
        %v954 = vand.u32 %v441, 4294901760
        %v955 = vsub.f32 %v441, %v954
        %v956 = vand.u32 %v955, 4294901760
        %957 = vmatmul.mubr.f32.gmra.mrb[0].mxu0 %v956
        %v958 = vpop.f32.mrb[0].mxu0
        %v959 = vadd.f32 %v831, %v958
        %v960 = vpop.f32.mrb[0].mxu0
        %961 = vmatprep.mubr.f32.mxu0 0.0
        %v962 = vand.u32 %v444, 4294901760
        %v963 = vsub.f32 %v444, %v962
        %v964 = vand.u32 %v963, 4294901760
        %965 = vmatmul.mubr.f32.gmra.mrb[0].mxu0 %v964
        %v966 = vpop.f32.mrb[0].mxu0
        %v967 = vadd.f32 %v838, %v966
        %v968 = vpop.f32.mrb[0].mxu0
        %969 = vmatprep.mubr.f32.mxu0 0.0
        %v970 = vand.u32 %v447, 4294901760
        %v971 = vsub.f32 %v447, %v970
        %v972 = vand.u32 %v971, 4294901760
        %973 = vmatmul.mubr.f32.gmra.mrb[0].mxu0 %v972
        %v974 = vpop.f32.mrb[0].mxu0
        %v975 = vadd.f32 %v845, %v974
        %v976 = vpop.f32.mrb[0].mxu0
        %977 = vmatprep.mubr.f32.mxu0 0.0
        %v978 = vand.u32 %v450, 4294901760
        %v979 = vsub.f32 %v450, %v978
        %v980 = vand.u32 %v979, 4294901760
        %981 = vmatmul.mubr.f32.gmra.mrb[0].mxu0 %v980
        %v982 = vpop.f32.mrb[0].mxu0
        %v983 = vadd.f32 %v852, %v982
        %v984 = vpop.f32.mrb[0].mxu0
        %985 = vmatprep.mubr.f32.mxu0 0.0
        %v986 = vand.u32 %v453, 4294901760
        %v987 = vsub.f32 %v453, %v986
        %v988 = vand.u32 %v987, 4294901760
        %989 = vmatmul.mubr.f32.gmra.mrb[0].mxu0 %v988
        %v990 = vpop.f32.mrb[0].mxu0
        %v991 = vadd.f32 %v859, %v990
        %v992 = vpop.f32.mrb[0].mxu0
        %993 = vmatprep.mubr.f32.mxu0 0.0
        %v994 = vand.u32 %v456, 4294901760
        %v995 = vsub.f32 %v456, %v994
        %v996 = vand.u32 %v995, 4294901760
        %997 = vmatmul.mubr.f32.gmra.mrb[0].mxu0 %v996
        %v998 = vpop.f32.mrb[0].mxu0
        %v999 = vadd.f32 %v866, %v998
        %v1000 = vpop.f32.mrb[0].mxu0
        %1001 = vdwg.mxu0
        %1002 = vmatprep.subr.mxu0 0.0
        %v1003 = vand.u32 %v430, 4294901760
        %v1004 = vsub.f32 %v430, %v1003
        %v1005 = vand.u32 %v1004, 4294901760
        %1006 = vmatpush1.msra.mxu0 %v1005
        %1007 = vmatprep.subr.mxu0 0.0
        %v1008 = vand.u32 %v431, 4294901760
        %v1009 = vsub.f32 %v431, %v1008
        %v1010 = vand.u32 %v1009, 4294901760
        %1011 = vmatpush1.msra.mxu0 %v1010
        %1012 = vmatprep.subr.mxu0 0.0
        %v1013 = vand.u32 %v432, 4294901760
        %v1014 = vsub.f32 %v432, %v1013
        %v1015 = vand.u32 %v1014, 4294901760
        %1016 = vmatpush1.msra.mxu0 %v1015
        %1017 = vmatprep.subr.mxu0 0.0
        %v1018 = vand.u32 %v433, 4294901760
        %v1019 = vsub.f32 %v433, %v1018
        %v1020 = vand.u32 %v1019, 4294901760
        %1021 = vmatpush1.msra.mxu0 %v1020
        %1022 = vmatprep.subr.mxu0 0.0
        %1023 = vmatpush1.msra.mxu0 0.0
        %1024 = vmatprep.subr.mxu0 0.0
        %1025 = vmatpush1.msra.mxu0 0.0
        %1026 = vmatprep.subr.mxu0 0.0
        %1027 = vmatpush1.msra.mxu0 0.0
        %1028 = vmatprep.subr.mxu0 0.0
        %1029 = vmatpush1.msra.mxu0 0.0
        %1030 = vmatprep.subr.mxu0 0.0
        %1031 = vmatpush1.msra.mxu0 0.0
        %1032 = vmatprep.subr.mxu0 0.0
        %1033 = vmatpush1.msra.mxu0 0.0
        %1034 = vmatprep.subr.mxu0 0.0
        %1035 = vmatpush1.msra.mxu0 0.0
        %1036 = vmatprep.subr.mxu0 0.0
        %1037 = vmatpush1.msra.mxu0 0.0
        %1038 = vmatprep.subr.mxu0 0.0
        %1039 = vmatpush1.msra.mxu0 0.0
        %1040 = vmatprep.subr.mxu0 0.0
        %1041 = vmatpush1.msra.mxu0 0.0
        %1042 = vmatprep.subr.mxu0 0.0
        %1043 = vmatpush1.msra.mxu0 0.0
        %1044 = vmatprep.subr.mxu0 0.0
        %1045 = vmatpush1.msra.mxu0 0.0
        %1046 = vmatprep.subr.mxu0 0.0
        %1047 = vmatpush1.msra.mxu0 0.0
        %1048 = vmatprep.subr.mxu0 0.0
        %1049 = vmatpush1.msra.mxu0 0.0
        %1050 = vmatprep.subr.mxu0 0.0
        %1051 = vmatpush1.msra.mxu0 0.0
        %1052 = vmatprep.subr.mxu0 0.0
        %1053 = vmatpush1.msra.mxu0 0.0
        %1054 = vmatprep.subr.mxu0 0.0
        %1055 = vmatpush1.msra.mxu0 0.0
        %1056 = vmatprep.subr.mxu0 0.0
        %1057 = vmatpush1.msra.mxu0 0.0
        %1058 = vmatprep.subr.mxu0 0.0
        %1059 = vmatpush1.msra.mxu0 0.0
        %1060 = vmatprep.subr.mxu0 0.0
        %1061 = vmatpush1.msra.mxu0 0.0
        %1062 = vmatprep.subr.mxu0 0.0
        %1063 = vmatpush1.msra.mxu0 0.0
        %1064 = vmatprep.subr.mxu0 0.0
        %1065 = vmatpush1.msra.mxu0 0.0
        %1066 = vmatprep.subr.mxu0 0.0
        %1067 = vmatpush1.msra.mxu0 0.0
        %1068 = vmatprep.subr.mxu0 0.0
        %1069 = vmatpush1.msra.mxu0 0.0
        %1070 = vmatprep.subr.mxu0 0.0
        %1071 = vmatpush1.msra.mxu0 0.0
        %1072 = vmatprep.subr.mxu0 0.0
        %1073 = vmatpush1.msra.mxu0 0.0
        %1074 = vmatprep.subr.mxu0 0.0
        %1075 = vmatpush1.msra.mxu0 0.0
        %1076 = vmatprep.subr.mxu0 0.0
        %1077 = vmatpush1.msra.mxu0 0.0
        %1078 = vmatprep.mubr.f32.mxu0 0.0
        %v1079 = vand.u32 %v435, 4294901760
        %1080 = vmatmul.mubr.f32.gmra.mrb[0].mxu0 %v1079
        %v1081 = vpop.f32.mrb[0].mxu0
        %v1082 = vadd.f32 %v943, %v1081
        %v1083 = vpop.f32.mrb[0].mxu0
        %1084 = vmatprep.mubr.f32.mxu0 0.0
        %v1085 = vand.u32 %v438, 4294901760
        %1086 = vmatmul.mubr.f32.gmra.mrb[0].mxu0 %v1085
        %v1087 = vpop.f32.mrb[0].mxu0
        %v1088 = vadd.f32 %v951, %v1087
        %v1089 = vpop.f32.mrb[0].mxu0
        %1090 = vmatprep.mubr.f32.mxu0 0.0
        %v1091 = vand.u32 %v441, 4294901760
        %1092 = vmatmul.mubr.f32.gmra.mrb[0].mxu0 %v1091
        %v1093 = vpop.f32.mrb[0].mxu0
        %v1094 = vadd.f32 %v959, %v1093
        %v1095 = vpop.f32.mrb[0].mxu0
        %1096 = vmatprep.mubr.f32.mxu0 0.0
        %v1097 = vand.u32 %v444, 4294901760
        %1098 = vmatmul.mubr.f32.gmra.mrb[0].mxu0 %v1097
        %v1099 = vpop.f32.mrb[0].mxu0
        %v1100 = vadd.f32 %v967, %v1099
        %v1101 = vpop.f32.mrb[0].mxu0
        %1102 = vmatprep.mubr.f32.mxu0 0.0
        %v1103 = vand.u32 %v447, 4294901760
        %1104 = vmatmul.mubr.f32.gmra.mrb[0].mxu0 %v1103
        %v1105 = vpop.f32.mrb[0].mxu0
        %v1106 = vadd.f32 %v975, %v1105
        %v1107 = vpop.f32.mrb[0].mxu0
        %1108 = vmatprep.mubr.f32.mxu0 0.0
        %v1109 = vand.u32 %v450, 4294901760
        %1110 = vmatmul.mubr.f32.gmra.mrb[0].mxu0 %v1109
        %v1111 = vpop.f32.mrb[0].mxu0
        %v1112 = vadd.f32 %v983, %v1111
        %v1113 = vpop.f32.mrb[0].mxu0
        %1114 = vmatprep.mubr.f32.mxu0 0.0
        %v1115 = vand.u32 %v453, 4294901760
        %1116 = vmatmul.mubr.f32.gmra.mrb[0].mxu0 %v1115
        %v1117 = vpop.f32.mrb[0].mxu0
        %v1118 = vadd.f32 %v991, %v1117
        %v1119 = vpop.f32.mrb[0].mxu0
        %1120 = vmatprep.mubr.f32.mxu0 0.0
        %v1121 = vand.u32 %v456, 4294901760
        %1122 = vmatmul.mubr.f32.gmra.mrb[0].mxu0 %v1121
        %v1123 = vpop.f32.mrb[0].mxu0
        %v1124 = vadd.f32 %v999, %v1123
        %v1125 = vpop.f32.mrb[0].mxu0
        %1126 = vdwg.mxu0
        %1127 = vmatprep.subr.mxu0 0.0
        %v1128 = vand.u32 %v430, 4294901760
        %1129 = vmatpush1.msra.mxu0 %v1128
        %1130 = vmatprep.subr.mxu0 0.0
        %v1131 = vand.u32 %v431, 4294901760
        %1132 = vmatpush1.msra.mxu0 %v1131
        %1133 = vmatprep.subr.mxu0 0.0
        %v1134 = vand.u32 %v432, 4294901760
        %1135 = vmatpush1.msra.mxu0 %v1134
        %1136 = vmatprep.subr.mxu0 0.0
        %v1137 = vand.u32 %v433, 4294901760
        %1138 = vmatpush1.msra.mxu0 %v1137
        %1139 = vmatprep.subr.mxu0 0.0
        %1140 = vmatpush1.msra.mxu0 0.0
        %1141 = vmatprep.subr.mxu0 0.0
        %1142 = vmatpush1.msra.mxu0 0.0
        %1143 = vmatprep.subr.mxu0 0.0
        %1144 = vmatpush1.msra.mxu0 0.0
        %1145 = vmatprep.subr.mxu0 0.0
        %1146 = vmatpush1.msra.mxu0 0.0
        %1147 = vmatprep.subr.mxu0 0.0
        %1148 = vmatpush1.msra.mxu0 0.0
        %1149 = vmatprep.subr.mxu0 0.0
        %1150 = vmatpush1.msra.mxu0 0.0
        %1151 = vmatprep.subr.mxu0 0.0
        %1152 = vmatpush1.msra.mxu0 0.0
        %1153 = vmatprep.subr.mxu0 0.0
        %1154 = vmatpush1.msra.mxu0 0.0
        %1155 = vmatprep.subr.mxu0 0.0
        %1156 = vmatpush1.msra.mxu0 0.0
        %1157 = vmatprep.subr.mxu0 0.0
        %1158 = vmatpush1.msra.mxu0 0.0
        %1159 = vmatprep.subr.mxu0 0.0
        %1160 = vmatpush1.msra.mxu0 0.0
        %1161 = vmatprep.subr.mxu0 0.0
        %1162 = vmatpush1.msra.mxu0 0.0
        %1163 = vmatprep.subr.mxu0 0.0
        %1164 = vmatpush1.msra.mxu0 0.0
        %1165 = vmatprep.subr.mxu0 0.0
        %1166 = vmatpush1.msra.mxu0 0.0
        %1167 = vmatprep.subr.mxu0 0.0
        %1168 = vmatpush1.msra.mxu0 0.0
        %1169 = vmatprep.subr.mxu0 0.0
        %1170 = vmatpush1.msra.mxu0 0.0
        %1171 = vmatprep.subr.mxu0 0.0
        %1172 = vmatpush1.msra.mxu0 0.0
        %1173 = vmatprep.subr.mxu0 0.0
        %1174 = vmatpush1.msra.mxu0 0.0
        %1175 = vmatprep.subr.mxu0 0.0
        %1176 = vmatpush1.msra.mxu0 0.0
        %1177 = vmatprep.subr.mxu0 0.0
        %1178 = vmatpush1.msra.mxu0 0.0
        %1179 = vmatprep.subr.mxu0 0.0
        %1180 = vmatpush1.msra.mxu0 0.0
        %1181 = vmatprep.subr.mxu0 0.0
        %1182 = vmatpush1.msra.mxu0 0.0
        %1183 = vmatprep.subr.mxu0 0.0
        %1184 = vmatpush1.msra.mxu0 0.0
        %1185 = vmatprep.subr.mxu0 0.0
        %1186 = vmatpush1.msra.mxu0 0.0
        %1187 = vmatprep.subr.mxu0 0.0
        %1188 = vmatpush1.msra.mxu0 0.0
        %1189 = vmatprep.subr.mxu0 0.0
        %1190 = vmatpush1.msra.mxu0 0.0
        %1191 = vmatprep.subr.mxu0 0.0
        %1192 = vmatpush1.msra.mxu0 0.0
        %1193 = vmatprep.subr.mxu0 0.0
        %1194 = vmatpush1.msra.mxu0 0.0
        %1195 = vmatprep.mubr.f32.mxu0 0.0
        %v1196 = vand.u32 %v435, 4294901760
        %1197 = vmatmul.mubr.f32.gmra.mrb[0].mxu0 %v1196
        %v1198 = vpop.f32.mrb[0].mxu0
        %v1199 = vadd.f32 %v1082, %v1198
        %v1200 = vpop.f32.mrb[0].mxu0
        %1201 = vmatprep.mubr.f32.mxu0 0.0
        %v1202 = vand.u32 %v438, 4294901760
        %1203 = vmatmul.mubr.f32.gmra.mrb[0].mxu0 %v1202
        %v1204 = vpop.f32.mrb[0].mxu0
        %v1205 = vadd.f32 %v1088, %v1204
        %v1206 = vpop.f32.mrb[0].mxu0
        %1207 = vmatprep.mubr.f32.mxu0 0.0
        %v1208 = vand.u32 %v441, 4294901760
        %1209 = vmatmul.mubr.f32.gmra.mrb[0].mxu0 %v1208
        %v1210 = vpop.f32.mrb[0].mxu0
        %v1211 = vadd.f32 %v1094, %v1210
        %v1212 = vpop.f32.mrb[0].mxu0
        %1213 = vmatprep.mubr.f32.mxu0 0.0
        %v1214 = vand.u32 %v444, 4294901760
        %1215 = vmatmul.mubr.f32.gmra.mrb[0].mxu0 %v1214
        %v1216 = vpop.f32.mrb[0].mxu0
        %v1217 = vadd.f32 %v1100, %v1216
        %v1218 = vpop.f32.mrb[0].mxu0
        %1219 = vmatprep.mubr.f32.mxu0 0.0
        %v1220 = vand.u32 %v447, 4294901760
        %1221 = vmatmul.mubr.f32.gmra.mrb[0].mxu0 %v1220
        %v1222 = vpop.f32.mrb[0].mxu0
        %v1223 = vadd.f32 %v1106, %v1222
        %v1224 = vpop.f32.mrb[0].mxu0
        %1225 = vmatprep.mubr.f32.mxu0 0.0
        %v1226 = vand.u32 %v450, 4294901760
        %1227 = vmatmul.mubr.f32.gmra.mrb[0].mxu0 %v1226
        %v1228 = vpop.f32.mrb[0].mxu0
        %v1229 = vadd.f32 %v1112, %v1228
        %v1230 = vpop.f32.mrb[0].mxu0
        %1231 = vmatprep.mubr.f32.mxu0 0.0
        %v1232 = vand.u32 %v453, 4294901760
        %1233 = vmatmul.mubr.f32.gmra.mrb[0].mxu0 %v1232
        %v1234 = vpop.f32.mrb[0].mxu0
        %v1235 = vadd.f32 %v1118, %v1234
        %v1236 = vpop.f32.mrb[0].mxu0
        %1237 = vmatprep.mubr.f32.mxu0 0.0
        %v1238 = vand.u32 %v456, 4294901760
        %1239 = vmatmul.mubr.f32.gmra.mrb[0].mxu0 %v1238
        %v1240 = vpop.f32.mrb[0].mxu0
        %v1241 = vadd.f32 %v1124, %v1240
        %v1242 = vpop.f32.mrb[0].mxu0
        %1243 = vdwg.mxu0
        %v1244 = vmul.f32 %v1199, %v1199
        %v1245 = vmul.f32 %v1205, %v1205
        %v1246 = vmul.f32 %v1211, %v1211
        %v1247 = vmul.f32 %v1217, %v1217
        %v1248 = vmul.f32 %v1223, %v1223
        %v1249 = vmul.f32 %v1229, %v1229
        %v1250 = vmul.f32 %v1235, %v1235
        %v1251 = vmul.f32 %v1241, %v1241
        %v1252 = vsel %vm235, %v1244, 0.0
        %1253 = vadd.xlane.f32.xlu0 %v1252
        %v1254 = vpop.xlane.xlu0 %1253
        %v1255 = vsel %vm235, %v1245, 0.0
        %1256 = vadd.xlane.f32.xlu0 %v1255
        %v1257 = vpop.xlane.xlu0 %1256
        %v1258 = vsel %vm235, %v1246, 0.0
        %1259 = vadd.xlane.f32.xlu0 %v1258
        %v1260 = vpop.xlane.xlu0 %1259
        %v1261 = vsel %vm235, %v1247, 0.0
        %1262 = vadd.xlane.f32.xlu0 %v1261
        %v1263 = vpop.xlane.xlu0 %1262
        %v1264 = vsel %vm235, %v1248, 0.0
        %1265 = vadd.xlane.f32.xlu0 %v1264
        %v1266 = vpop.xlane.xlu0 %1265
        %v1267 = vsel %vm235, %v1249, 0.0
        %1268 = vadd.xlane.f32.xlu0 %v1267
        %v1269 = vpop.xlane.xlu0 %1268
        %v1270 = vsel %vm235, %v1250, 0.0
        %1271 = vadd.xlane.f32.xlu0 %v1270
        %v1272 = vpop.xlane.xlu0 %1271
        %v1273 = vsel %vm235, %v1251, 0.0
        %1274 = vadd.xlane.f32.xlu0 %v1273
        %v1275 = vpop.xlane.xlu0 %1274
        %v1276 = vrsqrt.pop %v1254
        %v1277 = vmul.f32 %v1254, %v1276
        %vm1278 = vcmp.eq.f32.partialorder %v1254, inf
        %v1279 = vsel %vm1278, %v1254, %v1277
        %vm1280 = vcmp.eq.f32.partialorder %v1254, 0.0
        %v1281 = vand.u32 %v1254, 2147483648
        %v1282 = vsel %vm1280, %v1281, %v1279
        %v1283 = vrsqrt.pop %v1257
        %v1284 = vmul.f32 %v1257, %v1283
        %vm1285 = vcmp.eq.f32.partialorder %v1257, inf
        %v1286 = vsel %vm1285, %v1257, %v1284
        %vm1287 = vcmp.eq.f32.partialorder %v1257, 0.0
        %v1288 = vand.u32 %v1257, 2147483648
        %v1289 = vsel %vm1287, %v1288, %v1286
        %v1290 = vrsqrt.pop %v1260
        %v1291 = vmul.f32 %v1260, %v1290
        %vm1292 = vcmp.eq.f32.partialorder %v1260, inf
        %v1293 = vsel %vm1292, %v1260, %v1291
        %vm1294 = vcmp.eq.f32.partialorder %v1260, 0.0
        %v1295 = vand.u32 %v1260, 2147483648
        %v1296 = vsel %vm1294, %v1295, %v1293
        %v1297 = vrsqrt.pop %v1263
        %v1298 = vmul.f32 %v1263, %v1297
        %vm1299 = vcmp.eq.f32.partialorder %v1263, inf
        %v1300 = vsel %vm1299, %v1263, %v1298
        %vm1301 = vcmp.eq.f32.partialorder %v1263, 0.0
        %v1302 = vand.u32 %v1263, 2147483648
        %v1303 = vsel %vm1301, %v1302, %v1300
        %v1304 = vrsqrt.pop %v1266
        %v1305 = vmul.f32 %v1266, %v1304
        %vm1306 = vcmp.eq.f32.partialorder %v1266, inf
        %v1307 = vsel %vm1306, %v1266, %v1305
        %vm1308 = vcmp.eq.f32.partialorder %v1266, 0.0
        %v1309 = vand.u32 %v1266, 2147483648
        %v1310 = vsel %vm1308, %v1309, %v1307
        %v1311 = vrsqrt.pop %v1269
        %v1312 = vmul.f32 %v1269, %v1311
        %vm1313 = vcmp.eq.f32.partialorder %v1269, inf
        %v1314 = vsel %vm1313, %v1269, %v1312
        %vm1315 = vcmp.eq.f32.partialorder %v1269, 0.0
        %v1316 = vand.u32 %v1269, 2147483648
        %v1317 = vsel %vm1315, %v1316, %v1314
        %v1318 = vrsqrt.pop %v1272
        %v1319 = vmul.f32 %v1272, %v1318
        %vm1320 = vcmp.eq.f32.partialorder %v1272, inf
        %v1321 = vsel %vm1320, %v1272, %v1319
        %vm1322 = vcmp.eq.f32.partialorder %v1272, 0.0
        %v1323 = vand.u32 %v1272, 2147483648
        %v1324 = vsel %vm1322, %v1323, %v1321
        %v1325 = vrsqrt.pop %v1275
        %v1326 = vmul.f32 %v1275, %v1325
        %vm1327 = vcmp.eq.f32.partialorder %v1275, inf
        %v1328 = vsel %vm1327, %v1275, %v1326
        %vm1329 = vcmp.eq.f32.partialorder %v1275, 0.0
        %v1330 = vand.u32 %v1275, 2147483648
        %v1331 = vsel %vm1329, %v1330, %v1328
        %v1332 = vmax.f32 %v1282, 1e-15
        %v1333 = vmax.f32 %v1289, 1e-15
        %v1334 = vmax.f32 %v1296, 1e-15
        %v1335 = vmax.f32 %v1303, 1e-15
        %v1336 = vmax.f32 %v1310, 1e-15
        %v1337 = vmax.f32 %v1317, 1e-15
        %v1338 = vmax.f32 %v1324, 1e-15
        %v1339 = vmax.f32 %v1331, 1e-15
        %v1340 = vrcp.pop %v422
        %v1341 = vmul.f32 %v1332, %v1340
        %v1342 = vrcp.pop %v423
        %v1343 = vmul.f32 %v1333, %v1342
        %v1344 = vrcp.pop %v424
        %v1345 = vmul.f32 %v1334, %v1344
        %v1346 = vrcp.pop %v425
        %v1347 = vmul.f32 %v1335, %v1346
        %v1348 = vrcp.pop %v426
        %v1349 = vmul.f32 %v1336, %v1348
        %v1350 = vrcp.pop %v427
        %v1351 = vmul.f32 %v1337, %v1350
        %v1352 = vrcp.pop %v428
        %v1353 = vmul.f32 %v1338, %v1352
        %v1354 = vrcp.pop %v429
        %v1355 = vmul.f32 %v1339, %v1354
        %v1356 = vmul.f32 %v324, %v422
        %v1357 = vmul.f32 %v324, %v423
        %v1358 = vmul.f32 %v324, %v424
        %v1359 = vmul.f32 %v324, %v425
        %v1360 = vmul.f32 %v324, %v426
        %v1361 = vmul.f32 %v324, %v427
        %v1362 = vmul.f32 %v324, %v428
        %v1363 = vmul.f32 %v324, %v429
        %v1364 = vmax.f32 %v1356, -0.9999999
        %v1365 = vmax.f32 %v1357, -0.9999999
        %v1366 = vmax.f32 %v1358, -0.9999999
        %v1367 = vmax.f32 %v1359, -0.9999999
        %v1368 = vmax.f32 %v1360, -0.9999999
        %v1369 = vmax.f32 %v1361, -0.9999999
        %v1370 = vmax.f32 %v1362, -0.9999999
        %v1371 = vmax.f32 %v1363, -0.9999999
        %v1372 = vmin.f32 %v1364, 0.9999999
        %v1373 = vmin.f32 %v1365, 0.9999999
        %v1374 = vmin.f32 %v1366, 0.9999999
        %v1375 = vmin.f32 %v1367, 0.9999999
        %v1376 = vmin.f32 %v1368, 0.9999999
        %v1377 = vmin.f32 %v1369, 0.9999999
        %v1378 = vmin.f32 %v1370, 0.9999999
        %v1379 = vmin.f32 %v1371, 0.9999999
        %v1380 = vadd.f32 %v1372, 1.0
        %v1381 = vadd.f32 %v1373, 1.0
        %v1382 = vadd.f32 %v1374, 1.0
        %v1383 = vadd.f32 %v1375, 1.0
        %v1384 = vadd.f32 %v1376, 1.0
        %v1385 = vadd.f32 %v1377, 1.0
        %v1386 = vadd.f32 %v1378, 1.0
        %v1387 = vadd.f32 %v1379, 1.0
        %v1388 = vsub.f32 1.0, %v1372
        %v1389 = vsub.f32 1.0, %v1373
        %v1390 = vsub.f32 1.0, %v1374
        %v1391 = vsub.f32 1.0, %v1375
        %v1392 = vsub.f32 1.0, %v1376
        %v1393 = vsub.f32 1.0, %v1377
        %v1394 = vsub.f32 1.0, %v1378
        %v1395 = vsub.f32 1.0, %v1379
        %v1396 = vrcp.pop %v1388
        %v1397 = vmul.f32 %v1380, %v1396
        %v1398 = vrcp.pop %v1389
        %v1399 = vmul.f32 %v1381, %v1398
        %v1400 = vrcp.pop %v1390
        %v1401 = vmul.f32 %v1382, %v1400
        %v1402 = vrcp.pop %v1391
        %v1403 = vmul.f32 %v1383, %v1402
        %v1404 = vrcp.pop %v1392
        %v1405 = vmul.f32 %v1384, %v1404
        %v1406 = vrcp.pop %v1393
        %v1407 = vmul.f32 %v1385, %v1406
        %v1408 = vrcp.pop %v1394
        %v1409 = vmul.f32 %v1386, %v1408
        %v1410 = vrcp.pop %v1395
        %v1411 = vmul.f32 %v1387, %v1410
        %v1412 = vlog2.pop %v1397
        %v1413 = vmul.f32 %v1412, 0.6931472
        %v1414 = vlog2.pop %v1399
        %v1415 = vmul.f32 %v1414, 0.6931472
        %v1416 = vlog2.pop %v1401
        %v1417 = vmul.f32 %v1416, 0.6931472
        %v1418 = vlog2.pop %v1403
        %v1419 = vmul.f32 %v1418, 0.6931472
        %v1420 = vlog2.pop %v1405
        %v1421 = vmul.f32 %v1420, 0.6931472
        %v1422 = vlog2.pop %v1407
        %v1423 = vmul.f32 %v1422, 0.6931472
        %v1424 = vlog2.pop %v1409
        %v1425 = vmul.f32 %v1424, 0.6931472
        %v1426 = vlog2.pop %v1411
        %v1427 = vmul.f32 %v1426, 0.6931472
        %v1428 = vmul.f32 %v1413, 0.5
        %v1429 = vmul.f32 %v1415, 0.5
        %v1430 = vmul.f32 %v1417, 0.5
        %v1431 = vmul.f32 %v1419, 0.5
        %v1432 = vmul.f32 %v1421, 0.5
        %v1433 = vmul.f32 %v1423, 0.5
        %v1434 = vmul.f32 %v1425, 0.5
        %v1435 = vmul.f32 %v1427, 0.5
        %v1436 = vmul.f32 %v1341, %v1428
        %v1437 = vmul.f32 %v1343, %v1429
        %v1438 = vmul.f32 %v1345, %v1430
        %v1439 = vmul.f32 %v1347, %v1431
        %v1440 = vmul.f32 %v1349, %v1432
        %v1441 = vmul.f32 %v1351, %v1433
        %v1442 = vmul.f32 %v1353, %v1434
        %v1443 = vmul.f32 %v1355, %v1435
        %v1444 = vtanh.pop %v1436
        %v1445 = vtanh.pop %v1437
        %v1446 = vtanh.pop %v1438
        %v1447 = vtanh.pop %v1439
        %v1448 = vtanh.pop %v1440
        %v1449 = vtanh.pop %v1441
        %v1450 = vtanh.pop %v1442
        %v1451 = vtanh.pop %v1443
        %v1452 = vmul.f32 %v1332, %v324
        %v1453 = vmul.f32 %v1333, %v324
        %v1454 = vmul.f32 %v1334, %v324
        %v1455 = vmul.f32 %v1335, %v324
        %v1456 = vmul.f32 %v1336, %v324
        %v1457 = vmul.f32 %v1337, %v324
        %v1458 = vmul.f32 %v1338, %v324
        %v1459 = vmul.f32 %v1339, %v324
        %v1460 = vrcp.pop %v1452
        %v1461 = vmul.f32 %v1444, %v1460
        %v1462 = vrcp.pop %v1453
        %v1463 = vmul.f32 %v1445, %v1462
        %v1464 = vrcp.pop %v1454
        %v1465 = vmul.f32 %v1446, %v1464
        %v1466 = vrcp.pop %v1455
        %v1467 = vmul.f32 %v1447, %v1466
        %v1468 = vrcp.pop %v1456
        %v1469 = vmul.f32 %v1448, %v1468
        %v1470 = vrcp.pop %v1457
        %v1471 = vmul.f32 %v1449, %v1470
        %v1472 = vrcp.pop %v1458
        %v1473 = vmul.f32 %v1450, %v1472
        %v1474 = vrcp.pop %v1459
        %v1475 = vmul.f32 %v1451, %v1474
        %vm1476 = vcmp.gt.f32.partialorder %v1254, 0.0
        %vm1477 = vcmp.gt.f32.partialorder %v1257, 0.0
        %vm1478 = vcmp.gt.f32.partialorder %v1260, 0.0
        %vm1479 = vcmp.gt.f32.partialorder %v1263, 0.0
        %vm1480 = vcmp.gt.f32.partialorder %v1266, 0.0
        %vm1481 = vcmp.gt.f32.partialorder %v1269, 0.0
        %vm1482 = vcmp.gt.f32.partialorder %v1272, 0.0
        %vm1483 = vcmp.gt.f32.partialorder %v1275, 0.0
        %v1484 = vsel %vm1476, %v1461, 0.0
        %v1485 = vsel %vm1477, %v1463, 0.0
        %v1486 = vsel %vm1478, %v1465, 0.0
        %v1487 = vsel %vm1479, %v1467, 0.0
        %v1488 = vsel %vm1480, %v1469, 0.0
        %v1489 = vsel %vm1481, %v1471, 0.0
        %v1490 = vsel %vm1482, %v1473, 0.0
        %v1491 = vsel %vm1483, %v1475, 0.0
        %v1492 = vmul.f32 %v1484, %v1332
        %v1493 = vmul.f32 %v1485, %v1333
        %v1494 = vmul.f32 %v1486, %v1334
        %v1495 = vmul.f32 %v1487, %v1335
        %v1496 = vmul.f32 %v1488, %v1336
        %v1497 = vmul.f32 %v1489, %v1337
        %v1498 = vmul.f32 %v1490, %v1338
        %v1499 = vmul.f32 %v1491, %v1339
        %v1500 = vmax.f32 %v1492, 1e-15
        %v1501 = vmax.f32 %v1493, 1e-15
        %v1502 = vmax.f32 %v1494, 1e-15
        %v1503 = vmax.f32 %v1495, 1e-15
        %v1504 = vmax.f32 %v1496, 1e-15
        %v1505 = vmax.f32 %v1497, 1e-15
        %v1506 = vmax.f32 %v1498, 1e-15
        %v1507 = vmax.f32 %v1499, 1e-15
        %vm1508 = vcmp.gt.f32.partialorder %v1500, %v373
        %vm1509 = vcmp.gt.f32.partialorder %v1501, %v373
        %vm1510 = vcmp.gt.f32.partialorder %v1502, %v373
        %vm1511 = vcmp.gt.f32.partialorder %v1503, %v373
        %vm1512 = vcmp.gt.f32.partialorder %v1504, %v373
        %vm1513 = vcmp.gt.f32.partialorder %v1505, %v373
        %vm1514 = vcmp.gt.f32.partialorder %v1506, %v373
        %vm1515 = vcmp.gt.f32.partialorder %v1507, %v373
        %v1516 = vrcp.pop %v1500
        %v1517 = vmul.f32 %v373, %v1516
        %v1518 = vrcp.pop %v1501
        %v1519 = vmul.f32 %v373, %v1518
        %v1520 = vrcp.pop %v1502
        %v1521 = vmul.f32 %v373, %v1520
        %v1522 = vrcp.pop %v1503
        %v1523 = vmul.f32 %v373, %v1522
        %v1524 = vrcp.pop %v1504
        %v1525 = vmul.f32 %v373, %v1524
        %v1526 = vrcp.pop %v1505
        %v1527 = vmul.f32 %v373, %v1526
        %v1528 = vrcp.pop %v1506
        %v1529 = vmul.f32 %v373, %v1528
        %v1530 = vrcp.pop %v1507
        %v1531 = vmul.f32 %v373, %v1530
        %v1532 = vsel %vm1508, %v1517, 1.0
        %v1533 = vsel %vm1509, %v1519, 1.0
        %v1534 = vsel %vm1510, %v1521, 1.0
        %v1535 = vsel %vm1511, %v1523, 1.0
        %v1536 = vsel %vm1512, %v1525, 1.0
        %v1537 = vsel %vm1513, %v1527, 1.0
        %v1538 = vsel %vm1514, %v1529, 1.0
        %v1539 = vsel %vm1515, %v1531, 1.0
        %v1540 = vmul.f32 %v1484, %v1532
        %v1541 = vmul.f32 %v1485, %v1533
        %v1542 = vmul.f32 %v1486, %v1534
        %v1543 = vmul.f32 %v1487, %v1535
        %v1544 = vmul.f32 %v1488, %v1536
        %v1545 = vmul.f32 %v1489, %v1537
        %v1546 = vmul.f32 %v1490, %v1538
        %v1547 = vmul.f32 %v1491, %v1539
        %v1548 = vmin.f32 %v1500, %v373
        %v1549 = vmin.f32 %v1501, %v373
        %v1550 = vmin.f32 %v1502, %v373
        %v1551 = vmin.f32 %v1503, %v373
        %v1552 = vmin.f32 %v1504, %v373
        %v1553 = vmin.f32 %v1505, %v373
        %v1554 = vmin.f32 %v1506, %v373
        %v1555 = vmin.f32 %v1507, %v373
        %v1556 = vmul.f32 %v1548, %v1548
        %v1557 = vmul.f32 %v1549, %v1549
        %v1558 = vmul.f32 %v1550, %v1550
        %v1559 = vmul.f32 %v1551, %v1551
        %v1560 = vmul.f32 %v1552, %v1552
        %v1561 = vmul.f32 %v1553, %v1553
        %v1562 = vmul.f32 %v1554, %v1554
        %v1563 = vmul.f32 %v1555, %v1555
        %v1564 = vld [vmem:[%s3] sm:$0x1]
        %v1566 = vlaneseq
        %v1567 = vshrl.u32 %v1566, 7
        %v1568 = vsub.s32 0, %v1567
        %v1569 = vrot.slane %v1564, %v1568
        %v1571 = vmul.f32 %v1199, %v1569
        %v1572 = vmul.f32 %v1205, %v1569
        %v1573 = vmul.f32 %v1211, %v1569
        %v1574 = vmul.f32 %v1217, %v1569
        %v1575 = vmul.f32 %v1223, %v1569
        %v1576 = vmul.f32 %v1229, %v1569
        %v1577 = vmul.f32 %v1235, %v1569
        %v1578 = vmul.f32 %v1241, %v1569
        %v1579 = vsel %vm235, %v1571, 0.0
        %1580 = vadd.xlane.f32.xlu0 %v1579
        %v1581 = vpop.xlane.xlu0 %1580
        %v1582 = vsel %vm235, %v1572, 0.0
        %1583 = vadd.xlane.f32.xlu0 %v1582
        %v1584 = vpop.xlane.xlu0 %1583
        %v1585 = vsel %vm235, %v1573, 0.0
        %1586 = vadd.xlane.f32.xlu0 %v1585
        %v1587 = vpop.xlane.xlu0 %1586
        %v1588 = vsel %vm235, %v1574, 0.0
        %1589 = vadd.xlane.f32.xlu0 %v1588
        %v1590 = vpop.xlane.xlu0 %1589
        %v1591 = vsel %vm235, %v1575, 0.0
        %1592 = vadd.xlane.f32.xlu0 %v1591
        %v1593 = vpop.xlane.xlu0 %1592
        %v1594 = vsel %vm235, %v1576, 0.0
        %1595 = vadd.xlane.f32.xlu0 %v1594
        %v1596 = vpop.xlane.xlu0 %1595
        %v1597 = vsel %vm235, %v1577, 0.0
        %1598 = vadd.xlane.f32.xlu0 %v1597
        %v1599 = vpop.xlane.xlu0 %1598
        %v1600 = vsel %vm235, %v1578, 0.0
        %1601 = vadd.xlane.f32.xlu0 %v1600
        %v1602 = vpop.xlane.xlu0 %1601
        %v1603 = vmul.f32 %v1540, %v1581
        %v1604 = vmul.f32 %v1541, %v1584
        %v1605 = vmul.f32 %v1542, %v1587
        %v1606 = vmul.f32 %v1543, %v1590
        %v1607 = vmul.f32 %v1544, %v1593
        %v1608 = vmul.f32 %v1545, %v1596
        %v1609 = vmul.f32 %v1546, %v1599
        %v1610 = vmul.f32 %v1547, %v1602
        %s1611 = smul.f32 %s215, 2.0
        %v1612 = vstv %s1611
        %v1613 = vmul.f32 %v1612, %v1603
        %v1614 = vmul.f32 %v1612, %v1604
        %v1615 = vmul.f32 %v1612, %v1605
        %v1616 = vmul.f32 %v1612, %v1606
        %v1617 = vmul.f32 %v1612, %v1607
        %v1618 = vmul.f32 %v1612, %v1608
        %v1619 = vmul.f32 %v1612, %v1609
        %v1620 = vmul.f32 %v1612, %v1610
        %v1621 = vadd.f32 %v1613, 1.0
        %v1622 = vadd.f32 %v1614, 1.0
        %v1623 = vadd.f32 %v1615, 1.0
        %v1624 = vadd.f32 %v1616, 1.0
        %v1625 = vadd.f32 %v1617, 1.0
        %v1626 = vadd.f32 %v1618, 1.0
        %v1627 = vadd.f32 %v1619, 1.0
        %v1628 = vadd.f32 %v1620, 1.0
        %s1629 = smul.f32 %s215, %s215
        %v1630 = vstv %s1629
        %v1631 = vmul.f32 %v1630, %v1556
        %v1632 = vmul.f32 %v1630, %v1557
        %v1633 = vmul.f32 %v1630, %v1558
        %v1634 = vmul.f32 %v1630, %v1559
        %v1635 = vmul.f32 %v1630, %v1560
        %v1636 = vmul.f32 %v1630, %v1561
        %v1637 = vmul.f32 %v1630, %v1562
        %v1638 = vmul.f32 %v1630, %v1563
        %v1639 = vstv %s218
        %v1640 = vmul.f32 %v1631, %v1639
        %v1641 = vmul.f32 %v1632, %v1639
        %v1642 = vmul.f32 %v1633, %v1639
        %v1643 = vmul.f32 %v1634, %v1639
        %v1644 = vmul.f32 %v1635, %v1639
        %v1645 = vmul.f32 %v1636, %v1639
        %v1646 = vmul.f32 %v1637, %v1639
        %v1647 = vmul.f32 %v1638, %v1639
        %v1648 = vadd.f32 %v1621, %v1640
        %v1649 = vadd.f32 %v1622, %v1641
        %v1650 = vadd.f32 %v1623, %v1642
        %v1651 = vadd.f32 %v1624, %v1643
        %v1652 = vadd.f32 %v1625, %v1644
        %v1653 = vadd.f32 %v1626, %v1645
        %v1654 = vadd.f32 %v1627, %v1646
        %v1655 = vadd.f32 %v1628, %v1647
        %v1656 = vmax.f32 %v1648, 1e-15
        %v1657 = vmax.f32 %v1649, 1e-15
        %v1658 = vmax.f32 %v1650, 1e-15
        %v1659 = vmax.f32 %v1651, 1e-15
        %v1660 = vmax.f32 %v1652, 1e-15
        %v1661 = vmax.f32 %v1653, 1e-15
        %v1662 = vmax.f32 %v1654, 1e-15
        %v1663 = vmax.f32 %v1655, 1e-15
        %v1664 = vrcp.pop %v1656
        %v1665 = vmul.f32 1.0, %v1664
        %v1666 = vrcp.pop %v1657
        %v1667 = vmul.f32 1.0, %v1666
        %v1668 = vrcp.pop %v1658
        %v1669 = vmul.f32 1.0, %v1668
        %v1670 = vrcp.pop %v1659
        %v1671 = vmul.f32 1.0, %v1670
        %v1672 = vrcp.pop %v1660
        %v1673 = vmul.f32 1.0, %v1672
        %v1674 = vrcp.pop %v1661
        %v1675 = vmul.f32 1.0, %v1674
        %v1676 = vrcp.pop %v1662
        %v1677 = vmul.f32 1.0, %v1676
        %v1678 = vrcp.pop %v1663
        %v1679 = vmul.f32 1.0, %v1678
        %s1680 = smul.f32 %s215, %s218
        %v1681 = vstv %s1680
        %v1682 = vadd.f32 %v1621, %v1681
        %v1683 = vadd.f32 %v1622, %v1681
        %v1684 = vadd.f32 %v1623, %v1681
        %v1685 = vadd.f32 %v1624, %v1681
        %v1686 = vadd.f32 %v1625, %v1681
        %v1687 = vadd.f32 %v1626, %v1681
        %v1688 = vadd.f32 %v1627, %v1681
        %v1689 = vadd.f32 %v1628, %v1681
        %v1690 = vmul.f32 %v1682, %v1665
        %v1691 = vmul.f32 %v1683, %v1667
        %v1692 = vmul.f32 %v1684, %v1669
        %v1693 = vmul.f32 %v1685, %v1671
        %v1694 = vmul.f32 %v1686, %v1673
        %v1695 = vmul.f32 %v1687, %v1675
        %v1696 = vmul.f32 %v1688, %v1677
        %v1697 = vmul.f32 %v1689, %v1679
        %v1698 = vmul.f32 %v1690, %v1540
        %v1699 = vmul.f32 %v1691, %v1541
        %v1700 = vmul.f32 %v1692, %v1542
        %v1701 = vmul.f32 %v1693, %v1543
        %v1702 = vmul.f32 %v1694, %v1544
        %v1703 = vmul.f32 %v1695, %v1545
        %v1704 = vmul.f32 %v1696, %v1546
        %v1705 = vmul.f32 %v1697, %v1547
        %v1706 = vstv %s215
        %v1707 = vmul.f32 %v1706, %v1556
        %v1708 = vmul.f32 %v1706, %v1557
        %v1709 = vmul.f32 %v1706, %v1558
        %v1710 = vmul.f32 %v1706, %v1559
        %v1711 = vmul.f32 %v1706, %v1560
        %v1712 = vmul.f32 %v1706, %v1561
        %v1713 = vmul.f32 %v1706, %v1562
        %v1714 = vmul.f32 %v1706, %v1563
        %v1715 = vsub.f32 1.0, %v1707
        %v1716 = vsub.f32 1.0, %v1708
        %v1717 = vsub.f32 1.0, %v1709
        %v1718 = vsub.f32 1.0, %v1710
        %v1719 = vsub.f32 1.0, %v1711
        %v1720 = vsub.f32 1.0, %v1712
        %v1721 = vsub.f32 1.0, %v1713
        %v1722 = vsub.f32 1.0, %v1714
        %v1723 = vmul.f32 %v1715, %v1665
        %v1724 = vmul.f32 %v1716, %v1667
        %v1725 = vmul.f32 %v1717, %v1669
        %v1726 = vmul.f32 %v1718, %v1671
        %v1727 = vmul.f32 %v1719, %v1673
        %v1728 = vmul.f32 %v1720, %v1675
        %v1729 = vmul.f32 %v1721, %v1677
        %v1730 = vmul.f32 %v1722, %v1679
        %v1731 = vmul.f32 %v1698, %v1199
        %v1732 = vmul.f32 %v1699, %v1205
        %v1733 = vmul.f32 %v1700, %v1211
        %v1734 = vmul.f32 %v1701, %v1217
        %v1735 = vmul.f32 %v1702, %v1223
        %v1736 = vmul.f32 %v1703, %v1229
        %v1737 = vmul.f32 %v1704, %v1235
        %v1738 = vmul.f32 %v1705, %v1241
        %v1739 = vmul.f32 %v1723, %v1569
        %v1740 = vmul.f32 %v1724, %v1569
        %v1741 = vmul.f32 %v1725, %v1569
        %v1742 = vmul.f32 %v1726, %v1569
        %v1743 = vmul.f32 %v1727, %v1569
        %v1744 = vmul.f32 %v1728, %v1569
        %v1745 = vmul.f32 %v1729, %v1569
        %v1746 = vmul.f32 %v1730, %v1569
        %v1747 = vadd.f32 %v1731, %v1739
        %v1748 = vadd.f32 %v1732, %v1740
        %v1749 = vadd.f32 %v1733, %v1741
        %v1750 = vadd.f32 %v1734, %v1742
        %v1751 = vadd.f32 %v1735, %v1743
        %v1752 = vadd.f32 %v1736, %v1744
        %v1753 = vadd.f32 %v1737, %v1745
        %v1754 = vadd.f32 %v1738, %v1746
        %v1755 = vmul.f32 %v1747, %v1747
        %v1756 = vmul.f32 %v1748, %v1748
        %v1757 = vmul.f32 %v1749, %v1749
        %v1758 = vmul.f32 %v1750, %v1750
        %v1759 = vmul.f32 %v1751, %v1751
        %v1760 = vmul.f32 %v1752, %v1752
        %v1761 = vmul.f32 %v1753, %v1753
        %v1762 = vmul.f32 %v1754, %v1754
        %v1763 = vsel %vm235, %v1755, 0.0
        %1764 = vadd.xlane.f32.xlu0 %v1763
        %v1765 = vpop.xlane.xlu0 %1764
        %v1766 = vsel %vm235, %v1756, 0.0
        %1767 = vadd.xlane.f32.xlu0 %v1766
        %v1768 = vpop.xlane.xlu0 %1767
        %v1769 = vsel %vm235, %v1757, 0.0
        %1770 = vadd.xlane.f32.xlu0 %v1769
        %v1771 = vpop.xlane.xlu0 %1770
        %v1772 = vsel %vm235, %v1758, 0.0
        %1773 = vadd.xlane.f32.xlu0 %v1772
        %v1774 = vpop.xlane.xlu0 %1773
        %v1775 = vsel %vm235, %v1759, 0.0
        %1776 = vadd.xlane.f32.xlu0 %v1775
        %v1777 = vpop.xlane.xlu0 %1776
        %v1778 = vsel %vm235, %v1760, 0.0
        %1779 = vadd.xlane.f32.xlu0 %v1778
        %v1780 = vpop.xlane.xlu0 %1779
        %v1781 = vsel %vm235, %v1761, 0.0
        %1782 = vadd.xlane.f32.xlu0 %v1781
        %v1783 = vpop.xlane.xlu0 %1782
        %v1784 = vsel %vm235, %v1762, 0.0
        %1785 = vadd.xlane.f32.xlu0 %v1784
        %v1786 = vpop.xlane.xlu0 %1785
        %v1787 = vrsqrt.pop %v1765
        %v1788 = vmul.f32 %v1765, %v1787
        %vm1789 = vcmp.eq.f32.partialorder %v1765, inf
        %v1790 = vsel %vm1789, %v1765, %v1788
        %vm1791 = vcmp.eq.f32.partialorder %v1765, 0.0
        %v1792 = vand.u32 %v1765, 2147483648
        %v1793 = vsel %vm1791, %v1792, %v1790
        %v1794 = vrsqrt.pop %v1768
        %v1795 = vmul.f32 %v1768, %v1794
        %vm1796 = vcmp.eq.f32.partialorder %v1768, inf
        %v1797 = vsel %vm1796, %v1768, %v1795
        %vm1798 = vcmp.eq.f32.partialorder %v1768, 0.0
        %v1799 = vand.u32 %v1768, 2147483648
        %v1800 = vsel %vm1798, %v1799, %v1797
        %v1801 = vrsqrt.pop %v1771
        %v1802 = vmul.f32 %v1771, %v1801
        %vm1803 = vcmp.eq.f32.partialorder %v1771, inf
        %v1804 = vsel %vm1803, %v1771, %v1802
        %vm1805 = vcmp.eq.f32.partialorder %v1771, 0.0
        %v1806 = vand.u32 %v1771, 2147483648
        %v1807 = vsel %vm1805, %v1806, %v1804
        %v1808 = vrsqrt.pop %v1774
        %v1809 = vmul.f32 %v1774, %v1808
        %vm1810 = vcmp.eq.f32.partialorder %v1774, inf
        %v1811 = vsel %vm1810, %v1774, %v1809
        %vm1812 = vcmp.eq.f32.partialorder %v1774, 0.0
        %v1813 = vand.u32 %v1774, 2147483648
        %v1814 = vsel %vm1812, %v1813, %v1811
        %v1815 = vrsqrt.pop %v1777
        %v1816 = vmul.f32 %v1777, %v1815
        %vm1817 = vcmp.eq.f32.partialorder %v1777, inf
        %v1818 = vsel %vm1817, %v1777, %v1816
        %vm1819 = vcmp.eq.f32.partialorder %v1777, 0.0
        %v1820 = vand.u32 %v1777, 2147483648
        %v1821 = vsel %vm1819, %v1820, %v1818
        %v1822 = vrsqrt.pop %v1780
        %v1823 = vmul.f32 %v1780, %v1822
        %vm1824 = vcmp.eq.f32.partialorder %v1780, inf
        %v1825 = vsel %vm1824, %v1780, %v1823
        %vm1826 = vcmp.eq.f32.partialorder %v1780, 0.0
        %v1827 = vand.u32 %v1780, 2147483648
        %v1828 = vsel %vm1826, %v1827, %v1825
        %v1829 = vrsqrt.pop %v1783
        %v1830 = vmul.f32 %v1783, %v1829
        %vm1831 = vcmp.eq.f32.partialorder %v1783, inf
        %v1832 = vsel %vm1831, %v1783, %v1830
        %vm1833 = vcmp.eq.f32.partialorder %v1783, 0.0
        %v1834 = vand.u32 %v1783, 2147483648
        %v1835 = vsel %vm1833, %v1834, %v1832
        %v1836 = vrsqrt.pop %v1786
        %v1837 = vmul.f32 %v1786, %v1836
        %vm1838 = vcmp.eq.f32.partialorder %v1786, inf
        %v1839 = vsel %vm1838, %v1786, %v1837
        %vm1840 = vcmp.eq.f32.partialorder %v1786, 0.0
        %v1841 = vand.u32 %v1786, 2147483648
        %v1842 = vsel %vm1840, %v1841, %v1839
        %v1843 = vmax.f32 %v1793, 1e-15
        %v1844 = vmax.f32 %v1800, 1e-15
        %v1845 = vmax.f32 %v1807, 1e-15
        %v1846 = vmax.f32 %v1814, 1e-15
        %v1847 = vmax.f32 %v1821, 1e-15
        %v1848 = vmax.f32 %v1828, 1e-15
        %v1849 = vmax.f32 %v1835, 1e-15
        %v1850 = vmax.f32 %v1842, 1e-15
        %vm1851 = vcmp.gt.f32.partialorder %v1843, %v373
        %vm1852 = vcmp.gt.f32.partialorder %v1844, %v373
        %vm1853 = vcmp.gt.f32.partialorder %v1845, %v373
        %vm1854 = vcmp.gt.f32.partialorder %v1846, %v373
        %vm1855 = vcmp.gt.f32.partialorder %v1847, %v373
        %vm1856 = vcmp.gt.f32.partialorder %v1848, %v373
        %vm1857 = vcmp.gt.f32.partialorder %v1849, %v373
        %vm1858 = vcmp.gt.f32.partialorder %v1850, %v373
        %v1859 = vrcp.pop %v1843
        %v1860 = vmul.f32 %v373, %v1859
        %v1861 = vrcp.pop %v1844
        %v1862 = vmul.f32 %v373, %v1861
        %v1863 = vrcp.pop %v1845
        %v1864 = vmul.f32 %v373, %v1863
        %v1865 = vrcp.pop %v1846
        %v1866 = vmul.f32 %v373, %v1865
        %v1867 = vrcp.pop %v1847
        %v1868 = vmul.f32 %v373, %v1867
        %v1869 = vrcp.pop %v1848
        %v1870 = vmul.f32 %v373, %v1869
        %v1871 = vrcp.pop %v1849
        %v1872 = vmul.f32 %v373, %v1871
        %v1873 = vrcp.pop %v1850
        %v1874 = vmul.f32 %v373, %v1873
        %v1875 = vsel %vm1851, %v1860, 1.0
        %v1876 = vsel %vm1852, %v1862, 1.0
        %v1877 = vsel %vm1853, %v1864, 1.0
        %v1878 = vsel %vm1854, %v1866, 1.0
        %v1879 = vsel %vm1855, %v1868, 1.0
        %v1880 = vsel %vm1856, %v1870, 1.0
        %v1881 = vsel %vm1857, %v1872, 1.0
        %v1882 = vsel %vm1858, %v1874, 1.0
        %v1883 = vmin.f32 %v1843, %v373
        %v1884 = vmin.f32 %v1844, %v373
        %v1885 = vmin.f32 %v1845, %v373
        %v1886 = vmin.f32 %v1846, %v373
        %v1887 = vmin.f32 %v1847, %v373
        %v1888 = vmin.f32 %v1848, %v373
        %v1889 = vmin.f32 %v1849, %v373
        %v1890 = vmin.f32 %v1850, %v373
        %v1891 = vmul.f32 %v324, %v1883
        %v1892 = vmul.f32 %v324, %v1884
        %v1893 = vmul.f32 %v324, %v1885
        %v1894 = vmul.f32 %v324, %v1886
        %v1895 = vmul.f32 %v324, %v1887
        %v1896 = vmul.f32 %v324, %v1888
        %v1897 = vmul.f32 %v324, %v1889
        %v1898 = vmul.f32 %v324, %v1890
        %v1899 = vmax.f32 %v1891, -0.9999999
        %v1900 = vmax.f32 %v1892, -0.9999999
        %v1901 = vmax.f32 %v1893, -0.9999999
        %v1902 = vmax.f32 %v1894, -0.9999999
        %v1903 = vmax.f32 %v1895, -0.9999999
        %v1904 = vmax.f32 %v1896, -0.9999999
        %v1905 = vmax.f32 %v1897, -0.9999999
        %v1906 = vmax.f32 %v1898, -0.9999999
        %v1907 = vmin.f32 %v1899, 0.9999999
        %v1908 = vmin.f32 %v1900, 0.9999999
        %v1909 = vmin.f32 %v1901, 0.9999999
        %v1910 = vmin.f32 %v1902, 0.9999999
        %v1911 = vmin.f32 %v1903, 0.9999999
        %v1912 = vmin.f32 %v1904, 0.9999999
        %v1913 = vmin.f32 %v1905, 0.9999999
        %v1914 = vmin.f32 %v1906, 0.9999999
        %v1915 = vadd.f32 %v1907, 1.0
        %v1916 = vadd.f32 %v1908, 1.0
        %v1917 = vadd.f32 %v1909, 1.0
        %v1918 = vadd.f32 %v1910, 1.0
        %v1919 = vadd.f32 %v1911, 1.0
        %v1920 = vadd.f32 %v1912, 1.0
        %v1921 = vadd.f32 %v1913, 1.0
        %v1922 = vadd.f32 %v1914, 1.0
        %v1923 = vsub.f32 1.0, %v1907
        %v1924 = vsub.f32 1.0, %v1908
        %v1925 = vsub.f32 1.0, %v1909
        %v1926 = vsub.f32 1.0, %v1910
        %v1927 = vsub.f32 1.0, %v1911
        %v1928 = vsub.f32 1.0, %v1912
        %v1929 = vsub.f32 1.0, %v1913
        %v1930 = vsub.f32 1.0, %v1914
        %v1931 = vrcp.pop %v1923
        %v1932 = vmul.f32 %v1915, %v1931
        %v1933 = vrcp.pop %v1924
        %v1934 = vmul.f32 %v1916, %v1933
        %v1935 = vrcp.pop %v1925
        %v1936 = vmul.f32 %v1917, %v1935
        %v1937 = vrcp.pop %v1926
        %v1938 = vmul.f32 %v1918, %v1937
        %v1939 = vrcp.pop %v1927
        %v1940 = vmul.f32 %v1919, %v1939
        %v1941 = vrcp.pop %v1928
        %v1942 = vmul.f32 %v1920, %v1941
        %v1943 = vrcp.pop %v1929
        %v1944 = vmul.f32 %v1921, %v1943
        %v1945 = vrcp.pop %v1930
        %v1946 = vmul.f32 %v1922, %v1945
        %v1947 = vlog2.pop %v1932
        %v1948 = vmul.f32 %v1947, 0.6931472
        %v1949 = vlog2.pop %v1934
        %v1950 = vmul.f32 %v1949, 0.6931472
        %v1951 = vlog2.pop %v1936
        %v1952 = vmul.f32 %v1951, 0.6931472
        %v1953 = vlog2.pop %v1938
        %v1954 = vmul.f32 %v1953, 0.6931472
        %v1955 = vlog2.pop %v1940
        %v1956 = vmul.f32 %v1955, 0.6931472
        %v1957 = vlog2.pop %v1942
        %v1958 = vmul.f32 %v1957, 0.6931472
        %v1959 = vlog2.pop %v1944
        %v1960 = vmul.f32 %v1959, 0.6931472
        %v1961 = vlog2.pop %v1946
        %v1962 = vmul.f32 %v1961, 0.6931472
        %v1963 = vmul.f32 %v1948, 0.5
        %v1964 = vmul.f32 %v1950, 0.5
        %v1965 = vmul.f32 %v1952, 0.5
        %v1966 = vmul.f32 %v1954, 0.5
        %v1967 = vmul.f32 %v1956, 0.5
        %v1968 = vmul.f32 %v1958, 0.5
        %v1969 = vmul.f32 %v1960, 0.5
        %v1970 = vmul.f32 %v1962, 0.5
        %v1971 = vrcp.pop %v1891
        %v1972 = vmul.f32 %v1963, %v1971
        %v1973 = vrcp.pop %v1892
        %v1974 = vmul.f32 %v1964, %v1973
        %v1975 = vrcp.pop %v1893
        %v1976 = vmul.f32 %v1965, %v1975
        %v1977 = vrcp.pop %v1894
        %v1978 = vmul.f32 %v1966, %v1977
        %v1979 = vrcp.pop %v1895
        %v1980 = vmul.f32 %v1967, %v1979
        %v1981 = vrcp.pop %v1896
        %v1982 = vmul.f32 %v1968, %v1981
        %v1983 = vrcp.pop %v1897
        %v1984 = vmul.f32 %v1969, %v1983
        %v1985 = vrcp.pop %v1898
        %v1986 = vmul.f32 %v1970, %v1985
        %v1987 = vmul.f32 %v1875, %v1972
        %v1988 = vmul.f32 %v1876, %v1974
        %v1989 = vmul.f32 %v1877, %v1976
        %v1990 = vmul.f32 %v1878, %v1978
        %v1991 = vmul.f32 %v1879, %v1980
        %v1992 = vmul.f32 %v1880, %v1982
        %v1993 = vmul.f32 %v1881, %v1984
        %v1994 = vmul.f32 %v1882, %v1986
        %v1995 = vmul.f32 %v1747, %v1987
        %v1996 = vmul.f32 %v1748, %v1988
        %v1997 = vmul.f32 %v1749, %v1989
        %v1998 = vmul.f32 %v1750, %v1990
        %v1999 = vmul.f32 %v1751, %v1991
        %v2000 = vmul.f32 %v1752, %v1992
        %v2001 = vmul.f32 %v1753, %v1993
        %v2002 = vmul.f32 %v1754, %v1994
        %v2003 = vmax.f32 %v1995, 0.0
        %v2004 = vmax.f32 %v1996, 0.0
        %v2005 = vmax.f32 %v1997, 0.0
        %v2006 = vmax.f32 %v1998, 0.0
        %v2007 = vmax.f32 %v1999, 0.0
        %v2008 = vmax.f32 %v2000, 0.0
        %v2009 = vmax.f32 %v2001, 0.0
        %v2010 = vmax.f32 %v2002, 0.0
        %v2011 = vmul.f32 %v2003, %v2003
        %v2012 = vmul.f32 %v2004, %v2004
        %v2013 = vmul.f32 %v2005, %v2005
        %v2014 = vmul.f32 %v2006, %v2006
        %v2015 = vmul.f32 %v2007, %v2007
        %v2016 = vmul.f32 %v2008, %v2008
        %v2017 = vmul.f32 %v2009, %v2009
        %v2018 = vmul.f32 %v2010, %v2010
        %v2019 = vsel %vm235, %v2011, 0.0
        %2020 = vadd.xlane.f32.xlu0 %v2019
        %v2021 = vpop.xlane.xlu0 %2020
        %v2022 = vsel %vm235, %v2012, 0.0
        %2023 = vadd.xlane.f32.xlu0 %v2022
        %v2024 = vpop.xlane.xlu0 %2023
        %v2025 = vsel %vm235, %v2013, 0.0
        %2026 = vadd.xlane.f32.xlu0 %v2025
        %v2027 = vpop.xlane.xlu0 %2026
        %v2028 = vsel %vm235, %v2014, 0.0
        %2029 = vadd.xlane.f32.xlu0 %v2028
        %v2030 = vpop.xlane.xlu0 %2029
        %v2031 = vsel %vm235, %v2015, 0.0
        %2032 = vadd.xlane.f32.xlu0 %v2031
        %v2033 = vpop.xlane.xlu0 %2032
        %v2034 = vsel %vm235, %v2016, 0.0
        %2035 = vadd.xlane.f32.xlu0 %v2034
        %v2036 = vpop.xlane.xlu0 %2035
        %v2037 = vsel %vm235, %v2017, 0.0
        %2038 = vadd.xlane.f32.xlu0 %v2037
        %v2039 = vpop.xlane.xlu0 %2038
        %v2040 = vsel %vm235, %v2018, 0.0
        %2041 = vadd.xlane.f32.xlu0 %v2040
        %v2042 = vpop.xlane.xlu0 %2041
        %v2043 = vrsqrt.pop %v2021
        %v2044 = vmul.f32 %v2021, %v2043
        %vm2045 = vcmp.eq.f32.partialorder %v2021, inf
        %v2046 = vsel %vm2045, %v2021, %v2044
        %vm2047 = vcmp.eq.f32.partialorder %v2021, 0.0
        %v2048 = vand.u32 %v2021, 2147483648
        %v2049 = vsel %vm2047, %v2048, %v2046
        %v2050 = vrsqrt.pop %v2024
        %v2051 = vmul.f32 %v2024, %v2050
        %vm2052 = vcmp.eq.f32.partialorder %v2024, inf
        %v2053 = vsel %vm2052, %v2024, %v2051
        %vm2054 = vcmp.eq.f32.partialorder %v2024, 0.0
        %v2055 = vand.u32 %v2024, 2147483648
        %v2056 = vsel %vm2054, %v2055, %v2053
        %v2057 = vrsqrt.pop %v2027
        %v2058 = vmul.f32 %v2027, %v2057
        %vm2059 = vcmp.eq.f32.partialorder %v2027, inf
        %v2060 = vsel %vm2059, %v2027, %v2058
        %vm2061 = vcmp.eq.f32.partialorder %v2027, 0.0
        %v2062 = vand.u32 %v2027, 2147483648
        %v2063 = vsel %vm2061, %v2062, %v2060
        %v2064 = vrsqrt.pop %v2030
        %v2065 = vmul.f32 %v2030, %v2064
        %vm2066 = vcmp.eq.f32.partialorder %v2030, inf
        %v2067 = vsel %vm2066, %v2030, %v2065
        %vm2068 = vcmp.eq.f32.partialorder %v2030, 0.0
        %v2069 = vand.u32 %v2030, 2147483648
        %v2070 = vsel %vm2068, %v2069, %v2067
        %v2071 = vrsqrt.pop %v2033
        %v2072 = vmul.f32 %v2033, %v2071
        %vm2073 = vcmp.eq.f32.partialorder %v2033, inf
        %v2074 = vsel %vm2073, %v2033, %v2072
        %vm2075 = vcmp.eq.f32.partialorder %v2033, 0.0
        %v2076 = vand.u32 %v2033, 2147483648
        %v2077 = vsel %vm2075, %v2076, %v2074
        %v2078 = vrsqrt.pop %v2036
        %v2079 = vmul.f32 %v2036, %v2078
        %vm2080 = vcmp.eq.f32.partialorder %v2036, inf
        %v2081 = vsel %vm2080, %v2036, %v2079
        %vm2082 = vcmp.eq.f32.partialorder %v2036, 0.0
        %v2083 = vand.u32 %v2036, 2147483648
        %v2084 = vsel %vm2082, %v2083, %v2081
        %v2085 = vrsqrt.pop %v2039
        %v2086 = vmul.f32 %v2039, %v2085
        %vm2087 = vcmp.eq.f32.partialorder %v2039, inf
        %v2088 = vsel %vm2087, %v2039, %v2086
        %vm2089 = vcmp.eq.f32.partialorder %v2039, 0.0
        %v2090 = vand.u32 %v2039, 2147483648
        %v2091 = vsel %vm2089, %v2090, %v2088
        %v2092 = vrsqrt.pop %v2042
        %v2093 = vmul.f32 %v2042, %v2092
        %vm2094 = vcmp.eq.f32.partialorder %v2042, inf
        %v2095 = vsel %vm2094, %v2042, %v2093
        %vm2096 = vcmp.eq.f32.partialorder %v2042, 0.0
        %v2097 = vand.u32 %v2042, 2147483648
        %v2098 = vsel %vm2096, %v2097, %v2095
        %v2099 = vmax.f32 %v2049, 1e-15
        %v2100 = vmax.f32 %v2056, 1e-15
        %v2101 = vmax.f32 %v2063, 1e-15
        %v2102 = vmax.f32 %v2070, 1e-15
        %v2103 = vmax.f32 %v2077, 1e-15
        %v2104 = vmax.f32 %v2084, 1e-15
        %v2105 = vmax.f32 %v2091, 1e-15
        %v2106 = vmax.f32 %v2098, 1e-15
        %v2107 = vmul.f32 %v324, %v2099
        %v2108 = vmul.f32 %v324, %v2100
        %v2109 = vmul.f32 %v324, %v2101
        %v2110 = vmul.f32 %v324, %v2102
        %v2111 = vmul.f32 %v324, %v2103
        %v2112 = vmul.f32 %v324, %v2104
        %v2113 = vmul.f32 %v324, %v2105
        %v2114 = vmul.f32 %v324, %v2106
        %v2115 = vtanh.pop %v2107
        %v2116 = vtanh.pop %v2108
        %v2117 = vtanh.pop %v2109
        %v2118 = vtanh.pop %v2110
        %v2119 = vtanh.pop %v2111
        %v2120 = vtanh.pop %v2112
        %v2121 = vtanh.pop %v2113
        %v2122 = vtanh.pop %v2114
        %v2123 = vrcp.pop %v2107
        %v2124 = vmul.f32 %v2115, %v2123
        %v2125 = vrcp.pop %v2108
        %v2126 = vmul.f32 %v2116, %v2125
        %v2127 = vrcp.pop %v2109
        %v2128 = vmul.f32 %v2117, %v2127
        %v2129 = vrcp.pop %v2110
        %v2130 = vmul.f32 %v2118, %v2129
        %v2131 = vrcp.pop %v2111
        %v2132 = vmul.f32 %v2119, %v2131
        %v2133 = vrcp.pop %v2112
        %v2134 = vmul.f32 %v2120, %v2133
        %v2135 = vrcp.pop %v2113
        %v2136 = vmul.f32 %v2121, %v2135
        %v2137 = vrcp.pop %v2114
        %v2138 = vmul.f32 %v2122, %v2137
        %v2139 = vmul.f32 %v2124, %v2099
        %v2140 = vmul.f32 %v2126, %v2100
        %v2141 = vmul.f32 %v2128, %v2101
        %v2142 = vmul.f32 %v2130, %v2102
        %v2143 = vmul.f32 %v2132, %v2103
        %v2144 = vmul.f32 %v2134, %v2104
        %v2145 = vmul.f32 %v2136, %v2105
        %v2146 = vmul.f32 %v2138, %v2106
        %v2147 = vmax.f32 %v2139, 1e-15
        %v2148 = vmax.f32 %v2140, 1e-15
        %v2149 = vmax.f32 %v2141, 1e-15
        %v2150 = vmax.f32 %v2142, 1e-15
        %v2151 = vmax.f32 %v2143, 1e-15
        %v2152 = vmax.f32 %v2144, 1e-15
        %v2153 = vmax.f32 %v2145, 1e-15
        %v2154 = vmax.f32 %v2146, 1e-15
        %vm2155 = vcmp.gt.f32.partialorder %v2147, %v373
        %vm2156 = vcmp.gt.f32.partialorder %v2148, %v373
        %vm2157 = vcmp.gt.f32.partialorder %v2149, %v373
        %vm2158 = vcmp.gt.f32.partialorder %v2150, %v373
        %vm2159 = vcmp.gt.f32.partialorder %v2151, %v373
        %vm2160 = vcmp.gt.f32.partialorder %v2152, %v373
        %vm2161 = vcmp.gt.f32.partialorder %v2153, %v373
        %vm2162 = vcmp.gt.f32.partialorder %v2154, %v373
        %v2163 = vrcp.pop %v2147
        %v2164 = vmul.f32 %v373, %v2163
        %v2165 = vrcp.pop %v2148
        %v2166 = vmul.f32 %v373, %v2165
        %v2167 = vrcp.pop %v2149
        %v2168 = vmul.f32 %v373, %v2167
        %v2169 = vrcp.pop %v2150
        %v2170 = vmul.f32 %v373, %v2169
        %v2171 = vrcp.pop %v2151
        %v2172 = vmul.f32 %v373, %v2171
        %v2173 = vrcp.pop %v2152
        %v2174 = vmul.f32 %v373, %v2173
        %v2175 = vrcp.pop %v2153
        %v2176 = vmul.f32 %v373, %v2175
        %v2177 = vrcp.pop %v2154
        %v2178 = vmul.f32 %v373, %v2177
        %v2179 = vsel %vm2155, %v2164, 1.0
        %v2180 = vsel %vm2156, %v2166, 1.0
        %v2181 = vsel %vm2157, %v2168, 1.0
        %v2182 = vsel %vm2158, %v2170, 1.0
        %v2183 = vsel %vm2159, %v2172, 1.0
        %v2184 = vsel %vm2160, %v2174, 1.0
        %v2185 = vsel %vm2161, %v2176, 1.0
        %v2186 = vsel %vm2162, %v2178, 1.0
        %v2187 = vmul.f32 %v2124, %v2179
        %v2188 = vmul.f32 %v2126, %v2180
        %v2189 = vmul.f32 %v2128, %v2181
        %v2190 = vmul.f32 %v2130, %v2182
        %v2191 = vmul.f32 %v2132, %v2183
        %v2192 = vmul.f32 %v2134, %v2184
        %v2193 = vmul.f32 %v2136, %v2185
        %v2194 = vmul.f32 %v2138, %v2186
        %v2195 = vmul.f32 %v2003, %v2187
        %v2196 = vmul.f32 %v2004, %v2188
        %v2197 = vmul.f32 %v2005, %v2189
        %v2198 = vmul.f32 %v2006, %v2190
        %v2199 = vmul.f32 %v2007, %v2191
        %v2200 = vmul.f32 %v2008, %v2192
        %v2201 = vmul.f32 %v2009, %v2193
        %v2202 = vmul.f32 %v2010, %v2194
        %2203 = vst.msk [vmem:[%s213] sm:$0xff] %vm235, %v2195
        %2204 = vst.msk [vmem:[%s213 + $0x8] sm:$0xff] %vm235, %v2196
        %2205 = vst.msk [vmem:[%s213 + $0x10] sm:$0xff] %vm235, %v2197
        %2206 = vst.msk [vmem:[%s213 + $0x18] sm:$0xff] %vm235, %v2198
        %2207 = vst.msk [vmem:[%s213 + $0x20] sm:$0xff] %vm235, %v2199
        %2208 = vst.msk [vmem:[%s213 + $0x28] sm:$0xff] %vm235, %v2200
        %2209 = vst.msk [vmem:[%s213 + $0x30] sm:$0xff] %vm235, %v2201
        %2210 = vst.msk [vmem:[%s213 + $0x38] sm:$0xff] %vm235, %v2202
        %s2211 = smul.u32 8, %s16
        %p2212 = scmp.lt.s32.totalorder %s2211, 63
        %s2213 = scalar_select %p2212, %s2211, 63
        %s2214 = smul.addr %s2213, 8
        %s2215 = scalar_lea.vmem %s4, %s2214
        // Predicated region
        $region41: #{tpu_custom_call.1} parent=35 // pred_check
          %p2216 = pneg %p123
        $region42: #{tpu_custom_call.1} parent=35 // pred_check_branch
          %2218 = sbr.rel (%p2216) target = $region44
        $region43: #{tpu_custom_call.1} parent=35 // pred_region
          %s2219 = smul.u32 8, %s16
        $region44: #{tpu_custom_call.1} parent=35 // pred_fallthru
          _
      $region36: #{tpu_custom_call.1} parent=5 // pred_fallthru
        _
      %p2220 = scmp.le.s32.totalorder 2, %s11
      // Predicated region
      $region45: #{tpu_custom_call.1} parent=5 // pred_check
        %p2221 = pneg %p2220
      $region46: #{tpu_custom_call.1} parent=5 // pred_check_branch
        %2223 = sbr.rel (%p2221) target = $region48
      $region47: #{tpu_custom_call.1} parent=5 // pred_region
        %s2224 = ssub.s32 %s11, 2
        // Predicated region
        $region49: #{tpu_custom_call.1} parent=47 // pred_check
          %p2225 = pneg %p129
        $region50: #{tpu_custom_call.1} parent=47 // pred_check_branch
          %2227 = sbr.rel (%p2225) target = $region52
        $region51: #{tpu_custom_call.1} parent=47 // pred_region
          %s2228 = smul.u32 8, %s17
          %p2229 = scmp.lt.s32.totalorder %s2228, 63
          %s2230 = scalar_select %p2229, %s2228, 63
          %s2231 = smul.addr %s2230, 8
          %s2232 = scalar_lea.vmem %s4, %s2231
        $region52: #{tpu_custom_call.1} parent=47 // pred_fallthru
          _
      $region48: #{tpu_custom_call.1} parent=5 // pred_fallthru
        _
    $region6: #{tpu_custom_call.1} parent=1 // loop_footer
      %s15 = sadd.s32 1, %s11
    $region7: #{tpu_custom_call.1} parent=1 // loop_footer_branch
      %10 = sbr.rel target = $region3
    $region8: #{tpu_custom_call.1} parent=1 // loop_exit
      _
    %2233 = vsyncpa [#allocation3], 1
    %s2234 = scalar_lea.sflag [#allocation3], 1
    %2235 = vsyncpa %s2234, 1

</llo_original>
